<compile_context>
chip_gen: v7x
topology: tpu7x:2x2x1
jax: 0.10.0
libtpu: 0.0.40
codegen_flags: <defaults>
</compile_context>

<pallas_src>
import functools

import jax
import jax.numpy as jnp
from jax.experimental import pallas as pl
from jax.experimental.pallas import tpu as pltpu

HIDDEN_IN = 64   # GCNConv input features
HIDDEN = 32      # GCNConv output features
LANE = 128       # lane width; class dim padded to this for lane-dense stores
VMEM_LIMIT = 48 * 1024 * 1024


def _round_up(x, m):
    return ((x + m - 1) // m) * m


def _pick_tile(n_pad, target, *, at_least_two=False):
    """Largest multiple of 128 <= target (clamped to n_pad) whose tile-rounding waste on
    n_pad stays below ~12.5%.  at_least_two caps the tile so the row grid has >= 2 tiles
    (keeps both v7x TensorCores busy); v5e/v6e are unaffected."""
    target = max(LANE, (int(target) // LANE) * LANE)
    cap = n_pad
    if at_least_two and n_pad >= 2 * LANE:
        cap = (n_pad // 2 // LANE) * LANE
    t = min(target, cap)
    max_waste = max(LANE, n_pad // 8)
    while t > LANE and (_round_up(n_pad, t) - n_pad) > max_waste:
        t -= LANE
    return max(t, LANE)


# ------------- Kernel 1: XW_scaled = dinv[:,None] * (X @ W1)  (hoisted) -------------
def _xw_kernel(x_ref, w1_ref, dinv_ref, xw_ref):
    xw = jnp.dot(x_ref[...], w1_ref[...], preferred_element_type=jnp.float32)
    xw_ref[...] = (dinv_ref[...] * xw).astype(xw_ref.dtype)


def _compute_xw(x_pad_bf16, w1_bf16, dinv_cols, *, tile):
    n_pad = x_pad_bf16.shape[0]
    return pl.pallas_call(
        _xw_kernel,
        out_shape=jax.ShapeDtypeStruct((n_pad, HIDDEN), jnp.bfloat16),
        grid_spec=pltpu.PrefetchScalarGridSpec(
            num_scalar_prefetch=0,
            grid=(n_pad // tile,),
            in_specs=[
                pl.BlockSpec((tile, HIDDEN_IN), lambda i: (i, 0)),
                pl.BlockSpec((HIDDEN_IN, HIDDEN), lambda i: (0, 0)),
                pl.BlockSpec((tile, 1), lambda i: (i, 0)),
            ],
            out_specs=pl.BlockSpec((tile, HIDDEN), lambda i: (i, 0)),
        ),
        compiler_params=pltpu.CompilerParams(
            dimension_semantics=("parallel",),
            vmem_limit_bytes=VMEM_LIMIT,
        ),
    )(x_pad_bf16, w1_bf16, dinv_cols)


# -- Kernel 2: Z = relu(dinv_r * (M_int8 @ XW_s) + b1) @ W2 + b2  (tiled, block-sparse) --
def _graphmix_forward_padded(nnz, cmap, a_raw, xw, dinv_rows, b1, w2, b2, *, tm, tk):
    n_rows, n_cols = a_raw.shape
    nrb, ncb = n_rows // tm, n_cols // tk

    def kernel(nnz_ref, cmap_ref, a_ref, xw_ref, dr_ref, b1_ref, w2_ref, b2_ref,
               out_ref, acc_ref):
        i = pl.program_id(0)
        k = pl.program_id(1)

        @pl.when(k == 0)
        def _():
            acc_ref[...] = jnp.zeros_like(acc_ref)

        # Only nonzero column blocks contribute; padded steps repeat the previous block
        # index in the index_map (no re-DMA) and are skipped here.
        @pl.when(k < nnz_ref[i])
        def _():
            a_bf16 = a_ref[...].astype(jnp.float32).astype(jnp.bfloat16)
            off = pl.multiple_of(cmap_ref[i, k] * tk, 128)
            xw_blk = xw_ref[pl.ds(off, tk), :]            # slice of resident XW (bf16)
            acc_ref[...] += jnp.dot(a_bf16, xw_blk,
                                    preferred_element_type=jnp.float32)

        @pl.when(k == pl.num_programs(1) - 1)
        def _():
            h = dr_ref[...] * acc_ref[...] + b1_ref[...]   # f32 row scaling + GCN bias
            emb = jnp.maximum(h, 0.0).astype(jnp.bfloat16)  # ReLU, bf16 for the head MXU
            out_ref[...] = (
                jnp.dot(emb, w2_ref[...], preferred_element_type=jnp.float32)
                + b2_ref[...]
            )                                               # lane-dense (tm, 128) f32 store

    return pl.pallas_call(
        kernel,
        out_shape=jax.ShapeDtypeStruct((n_rows, LANE), jnp.float32),
        grid_spec=pltpu.PrefetchScalarGridSpec(
            num_scalar_prefetch=2,                          # nnz, cmap -> SMEM
            grid=(nrb, ncb),                                # reduction axis last
            in_specs=[
                # raw int8 A tile; column block chosen by the prefetched block map
                pl.BlockSpec((tm, tk), lambda i, k, nnz, cmap: (i, cmap[i, k])),
                # XW_scaled fully resident in VMEM (loaded once)
                pl.BlockSpec((n_cols, HIDDEN), lambda i, k, nnz, cmap: (0, 0)),
                pl.BlockSpec((tm, 1), lambda i, k, nnz, cmap: (i, 0)),       # dinv rows
                pl.BlockSpec((1, HIDDEN), lambda i, k, nnz, cmap: (0, 0)),   # b1 (f32)
                pl.BlockSpec((HIDDEN, LANE), lambda i, k, nnz, cmap: (0, 0)),  # W2 (bf16)
                pl.BlockSpec((1, LANE), lambda i, k, nnz, cmap: (0, 0)),     # b2 (f32)
            ],
            out_specs=pl.BlockSpec((tm, LANE), lambda i, k, nnz, cmap: (i, 0)),
            scratch_shapes=[pltpu.VMEM((tm, HIDDEN), jnp.float32)],
        ),
        compiler_params=pltpu.CompilerParams(
            dimension_semantics=("parallel", "arbitrary"),
            vmem_limit_bytes=VMEM_LIMIT,
        ),
    )(nnz, cmap, a_raw, xw, dinv_rows, b1, w2, b2)


# ------------------------------------ JAX glue ------------------------------------
def net_cell_forward(params, embedding, edge_index, *, tm=512, tk=2048):
    """embedding: [N, 64] f32; edge_index: [2, E] int32 -> [N, num_of_class] f32.

    Defaults target v5e/v6e; on v7x larger tk (4096-8192) amortizes step overhead
    against its ~3.2 TB/s HBM while still fitting the 64 MiB VMEM.
    """
    n = embedding.shape[0]
    num_class = params["w_out"].shape[1]
    assert num_class <= LANE

    # Pad N to a lane multiple first, then pick tiles with bounded padding waste.
    n128 = _round_up(n, LANE)
    tm_eff = _pick_tile(n128, tm, at_least_two=True)   # >= 2 row tiles when possible (v7x)
    tk_eff = _pick_tile(n128, tk)
    n_rows = _round_up(n128, tm_eff)
    n_cols = _round_up(n128, tk_eff)
    nrb, ncb = n_rows // tm_eff, n_cols // tk_eff

    src, dst = edge_index[0], edge_index[1]
    nodes = jnp.arange(n, dtype=jnp.int32)

    # Raw Â = A + (missing) self-loops as int8 counts, built directly at padded shape.
    # PyG convention: messages aggregate at the target, duplicates scatter-add;
    # add_remaining_self_loops only adds a self-loop where none exists.
    a_raw = jnp.zeros((n_rows, n_cols), jnp.int8).at[dst, src].add(jnp.int8(1))
    diag = a_raw[nodes, nodes]
    a_raw = a_raw.at[nodes, nodes].add(jnp.where(diag > 0, 0, 1).astype(jnp.int8))

    # Node degrees / D^-1/2 straight from the edge list (no N^2 read pass).
    in_deg = jnp.zeros((n,), jnp.float32).at[dst].add(1.0)
    self_cnt = jnp.zeros((n,), jnp.float32).at[dst].add(
        jnp.where(src == dst, 1.0, 0.0))
    deg = in_deg + jnp.where(self_cnt > 0, 0.0, 1.0)
    dinv = jnp.where(deg > 0, jax.lax.rsqrt(deg), 0.0)
    dinv_rows = jnp.zeros((n_rows, 1), jnp.float32).at[:n, 0].set(dinv)
    dinv_cols = jnp.zeros((n_cols, 1), jnp.float32).at[:n, 0].set(dinv)

    # Per-row-block nonzero column-block map (from the edge list, O(E + N)).
    rb, cb = dst // tm_eff, src // tk_eff
    blkmask = jnp.zeros((nrb, ncb), jnp.bool_).at[rb, cb].set(True)
    blkmask = blkmask.at[nodes // tm_eff, nodes // tk_eff].set(True)   # self loops
    nnz = jnp.sum(blkmask, axis=1).astype(jnp.int32)                   # (nrb,)
    order = jnp.argsort(jnp.logical_not(blkmask).astype(jnp.int32),
                        axis=1).astype(jnp.int32)                      # nonzero blocks first
    last_valid = order[jnp.arange(nrb), jnp.maximum(nnz - 1, 0)]
    cmap = jnp.where(jnp.arange(ncb, dtype=jnp.int32)[None, :] < nnz[:, None],
                     order, last_valid[:, None]).astype(jnp.int32)

    # Hoisted XW_scaled = dinv[:,None] * (X @ W1), bf16 (padded rows contribute zero).
    x_pad = jnp.zeros((n_cols, HIDDEN_IN), jnp.bfloat16).at[:n, :].set(
        embedding.astype(jnp.bfloat16))
    xw = _compute_xw(x_pad, params["w_gcn"].astype(jnp.bfloat16), dinv_cols, tile=tk_eff)

    # Tiny output head padded to 128 lanes; weights bf16, bias f32.
    w2_pad = jnp.zeros((HIDDEN, LANE), jnp.float32).at[:, :num_class].set(
        params["w_out"]).astype(jnp.bfloat16)
    b2_pad = jnp.zeros((1, LANE), jnp.float32).at[:, :num_class].set(params["b_out"])
    b1 = params["b_gcn"].reshape(1, HIDDEN).astype(jnp.float32)

    z_pad = _graphmix_forward_padded(
        nnz, cmap, a_raw, xw, dinv_rows, b1, w2_pad, b2_pad, tm=tm_eff, tk=tk_eff)
    return z_pad[:n, :num_class]


def _reference_forward(params, embedding, edge_index):
    """Plain-JAX f32 reference with the same normalization / self-loop convention."""
    n = embedding.shape[0]
    src, dst = edge_index[0], edge_index[1]
    idx = jnp.arange(n)
    m = jnp.zeros((n, n), jnp.float32).at[dst, src].add(1.0)
    diag = m[idx, idx]
    m = m.at[idx, idx].add(jnp.where(diag > 0, 0.0, 1.0))
    deg = jnp.sum(m, axis=1)
    dinv = jnp.where(deg > 0, jax.lax.rsqrt(deg), 0.0)
    a_hat = dinv[:, None] * m * dinv[None, :]
    h = a_hat @ (embedding @ params["w_gcn"]) + params["b_gcn"]
    emb = jnp.maximum(h, 0.0)
    return emb @ params["w_out"] + params["b_out"]


def init_params(key, num_of_class):
    k1, k2, k3, k4 = jax.random.split(key, 4)
    # GCNConv(64, 32): weight [64, 32], bias [32]; Linear(32, C): weight [32, C], bias [C]
    return {
        "w_gcn": jax.random.normal(k1, (HIDDEN_IN, HIDDEN), jnp.float32) * 0.1,
        "b_gcn": jax.random.normal(k2, (1, HIDDEN), jnp.float32) * 0.01,
        "w_out": jax.random.normal(k3, (HIDDEN, num_of_class), jnp.float32) * 0.1,
        "b_out": jax.random.normal(k4, (1, num_of_class), jnp.float32) * 0.01,
    }


if __name__ == "__main__":
    key = jax.random.PRNGKey(0)
    k_param, k_x, k_e1, k_e2 = jax.random.split(key, 4)

    num_nodes = 300        # not a multiple of 128 -> exercises padding + slicing
    num_of_class = 4
    params = init_params(k_param, num_of_class)

    x = jax.random.normal(k_x, (num_nodes, HIDDEN_IN), jnp.float32)

    # Random directed edge list [2, E].  src restricted to [0, 160) so at tk=128 some
    # off-diagonal 128x128 blocks of A are all-zero -> exercises the block-skip path.
    num_edges = 900
    src = jax.random.randint(k_e1, (num_edges,), 0, 160, dtype=jnp.int32)
    dst = jax.random.randint(k_e2, (num_edges,), 0, num_nodes, dtype=jnp.int32)
    edge_index = jnp.stack([src, dst], axis=0)

    z_ref = _reference_forward(params, x, edge_index)

    # Small tiles: multi-block reduction + block-sparse skip path exercised.
    fwd_small = jax.jit(functools.partial(net_cell_forward, tm=128, tk=128))
    z1 = fwd_small(params, x, edge_index)
    jax.block_until_ready(z1)
    assert z1.shape == (num_nodes, num_of_class)
    err1 = float(jnp.max(jnp.abs(z1 - z_ref)))
    assert err1 < 1e-1, f"max abs err (tm=tk=128) {err1}"

    # Default (large) tiles: exercises padding-aware clamping for small graphs.
    fwd_default = jax.jit(net_cell_forward)
    z2 = fwd_default(params, x, edge_index)
    jax.block_until_ready(z2)
    err2 = float(jnp.max(jnp.abs(z2 - z_ref)))
    assert err2 < 1e-1, f"max abs err (default tiles) {err2}"

    print("KERNEL_OK")
</pallas_src>

<mosaic_0001>
module attributes {stable_mosaic.version = 11 : i64} {
  func.func @_xw_kernel(%arg0: i32, %arg1: memref<128x64xbf16, #tpu.memory_space<vmem>>, %arg2: memref<64x32xbf16, #tpu.memory_space<vmem>>, %arg3: memref<128x1xf32, #tpu.memory_space<vmem>>, %arg4: memref<128x32xbf16, #tpu.memory_space<vmem>>) attributes {dimension_semantics = [#tpu.dimension_semantics<parallel>], iteration_bounds = array<i64: 3>, scalar_prefetch = 0 : i64, scratch_operands = 0 : i64, tpu.core_type = #tpu.core_type<tc>, window_params = [{transform_indices = @transform_0, window_bounds = array<i64: 128, 64>}, {pipeline_mode = #tpu.pipeline_mode<synchronous>, transform_indices = @transform_1, window_bounds = array<i64: 64, 32>}, {transform_indices = @transform_2, window_bounds = array<i64: 128, 1>}, {transform_indices = @transform_3, window_bounds = array<i64: 128, 32>}]} {
    %c0 = arith.constant 0 : index
    %c0_0 = arith.constant 0 : index
    %0 = vector.load %arg1[%c0, %c0_0] : memref<128x64xbf16, #tpu.memory_space<vmem>>, vector<128x64xbf16>
    %c0_1 = arith.constant 0 : index
    %c0_2 = arith.constant 0 : index
    %1 = vector.load %arg2[%c0_1, %c0_2] : memref<64x32xbf16, #tpu.memory_space<vmem>>, vector<64x32xbf16>
    %cst = arith.constant dense<0.000000e+00> : vector<128x32xf32>
    %2 = tpu.matmul %0, %1, %cst {dimension_numbers = #tpu.dot_dimension_numbers<[1], [0], [0], [1], [0, 0, 1, 1], [], []>} : vector<128x64xbf16>, vector<64x32xbf16>, vector<128x32xf32> -> vector<128x32xf32>
    %c0_3 = arith.constant 0 : index
    %c0_4 = arith.constant 0 : index
    %3 = vector.load %arg3[%c0_3, %c0_4] : memref<128x1xf32, #tpu.memory_space<vmem>>, vector<128x1xf32>
    %4 = vector.broadcast %3 : vector<128x1xf32> to vector<128x32xf32>
    %5 = arith.mulf %4, %2 : vector<128x32xf32>
    %6 = arith.truncf %5 : vector<128x32xf32> to vector<128x32xbf16>
    %c0_5 = arith.constant 0 : index
    %c0_6 = arith.constant 0 : index
    %7 = vector.load %arg4[%c0_5, %c0_6] : memref<128x32xbf16, #tpu.memory_space<vmem>>, vector<128x32xbf16>
    tpu.vector_store %arg4[%c0_5, %c0_6], %6 {strides = array<i32>} : memref<128x32xbf16, #tpu.memory_space<vmem>>, vector<128x32xbf16>,
    return
  }
  func.func @transform_0(%arg0: i32) -> (i32, i32) {
    %c0_i32 = arith.constant 0 : i32
    %c0_i32_0 = arith.constant 0 : i32
    return %arg0, %c0_i32 : i32, i32
  }
  func.func @transform_1(%arg0: i32) -> (i32, i32) {
    %c0_i32 = arith.constant 0 : i32
    %c0_i32_0 = arith.constant 0 : i32
    %c0_i32_1 = arith.constant 0 : i32
    return %c0_i32, %c0_i32_0 : i32, i32
  }
  func.func @transform_2(%arg0: i32) -> (i32, i32) {
    %c0_i32 = arith.constant 0 : i32
    %c0_i32_0 = arith.constant 0 : i32
    return %arg0, %c0_i32 : i32, i32
  }
  func.func @transform_3(%arg0: i32) -> (i32, i32) {
    %c0_i32 = arith.constant 0 : i32
    %c0_i32_0 = arith.constant 0 : i32
    return %arg0, %c0_i32 : i32, i32
  }
}

module attributes {stable_mosaic.version = 11 : i64} {
  func.func @kernel(%arg0: i32, %arg1: i32, %arg2: memref<3xi32, #tpu.memory_space<smem>>, %arg3: memref<3x3xi32, #tpu.memory_space<smem>>, %arg4: memref<128x128xi8, #tpu.memory_space<vmem>>, %arg5: memref<384x32xbf16, #tpu.memory_space<vmem>>, %arg6: memref<128x1xf32, #tpu.memory_space<vmem>>, %arg7: memref<1x32xf32, #tpu.memory_space<vmem>>, %arg8: memref<32x128xbf16, #tpu.memory_space<vmem>>, %arg9: memref<1x128xf32, #tpu.memory_space<vmem>>, %arg10: memref<128x128xf32, #tpu.memory_space<vmem>>, %arg11: memref<128x32xf32, #tpu.memory_space<vmem>>) attributes {dimension_semantics = [#tpu.dimension_semantics<parallel>, #tpu.dimension_semantics<arbitrary>], iteration_bounds = array<i64: 3, 3>, scalar_prefetch = 2 : i64, scratch_operands = 1 : i64, tpu.core_type = #tpu.core_type<tc>, window_params = [{transform_indices = @transform_0, window_bounds = array<i64: 128, 128>}, {pipeline_mode = #tpu.pipeline_mode<synchronous>, transform_indices = @transform_1, window_bounds = array<i64: 384, 32>}, {transform_indices = @transform_2, window_bounds = array<i64: 128, 1>}, {pipeline_mode = #tpu.pipeline_mode<synchronous>, transform_indices = @transform_3, window_bounds = array<i64: 1, 32>}, {pipeline_mode = #tpu.pipeline_mode<synchronous>, transform_indices = @transform_4, window_bounds = array<i64: 32, 128>}, {pipeline_mode = #tpu.pipeline_mode<synchronous>, transform_indices = @transform_5, window_bounds = array<i64: 1, 128>}, {transform_indices = @transform_6, window_bounds = array<i64: 128, 128>}]} {
    %c0_i32 = arith.constant 0 : i32
    %0 = arith.cmpi eq, %arg1, %c0_i32 : i32
    %1 = arith.extui %0 : i1 to i32
    %c0_i32_0 = arith.constant 0 : i32
    %2 = arith.cmpi ne, %1, %c0_i32_0 : i32
    scf.if %2 {
      %cst = arith.constant 0.000000e+00 : f32
      %11 = vector.broadcast %cst : f32 to vector<128x32xf32>
      %c0 = arith.constant 0 : index
      %c0_3 = arith.constant 0 : index
      %12 = vector.load %arg11[%c0, %c0_3] : memref<128x32xf32, #tpu.memory_space<vmem>>, vector<128x32xf32>
      tpu.vector_store %arg11[%c0, %c0_3], %11 {strides = array<i32>} : memref<128x32xf32, #tpu.memory_space<vmem>>, vector<128x32xf32>,
    } else {
    }
    %3 = arith.index_cast %arg0 : i32 to index
    %4 = memref.load %arg2[%3] : memref<3xi32, #tpu.memory_space<smem>>
    %5 = arith.cmpi slt, %arg1, %4 : i32
    %6 = arith.extui %5 : i1 to i32
    %c0_i32_1 = arith.constant 0 : i32
    %7 = arith.cmpi ne, %6, %c0_i32_1 : i32
    scf.if %7 {
      %c0 = arith.constant 0 : index
      %c0_3 = arith.constant 0 : index
      %11 = vector.load %arg4[%c0, %c0_3] : memref<128x128xi8, #tpu.memory_space<vmem>>, vector<128x128xi8>
      %12 = arith.sitofp %11 : vector<128x128xi8> to vector<128x128xf32>
      %13 = arith.truncf %12 : vector<128x128xf32> to vector<128x128xbf16>
      %14 = arith.index_cast %arg0 : i32 to index
      %15 = arith.index_cast %arg1 : i32 to index
      %16 = memref.load %arg3[%14, %15] : memref<3x3xi32, #tpu.memory_space<smem>>
      %c128_i32 = arith.constant 128 : i32
      %17 = arith.muli %16, %c128_i32 : i32
      %18 = tpu.assume_multiple %17, 128 : i32
      %19 = arith.index_cast %18 : i32 to index
      %c0_4 = arith.constant 0 : index
      %20 = vector.load %arg5[%19, %c0_4] : memref<384x32xbf16, #tpu.memory_space<vmem>>, vector<128x32xbf16>
      %c0_5 = arith.constant 0 : index
      %c0_6 = arith.constant 0 : index
      %21 = vector.load %arg11[%c0_5, %c0_6] : memref<128x32xf32, #tpu.memory_space<vmem>>, vector<128x32xf32>
      %cst = arith.constant dense<0.000000e+00> : vector<128x32xf32>
      %22 = tpu.matmul %13, %20, %cst {dimension_numbers = #tpu.dot_dimension_numbers<[1], [0], [0], [1], [0, 0, 1, 1], [], []>} : vector<128x128xbf16>, vector<128x32xbf16>, vector<128x32xf32> -> vector<128x32xf32>
      %23 = arith.addf %21, %22 : vector<128x32xf32>
      %c0_7 = arith.constant 0 : index
      %c0_8 = arith.constant 0 : index
      %24 = vector.load %arg11[%c0_7, %c0_8] : memref<128x32xf32, #tpu.memory_space<vmem>>, vector<128x32xf32>
      tpu.vector_store %arg11[%c0_7, %c0_8], %23 {strides = array<i32>} : memref<128x32xf32, #tpu.memory_space<vmem>>, vector<128x32xf32>,
    } else {
    }
    %c2_i32 = arith.constant 2 : i32
    %8 = arith.cmpi eq, %arg1, %c2_i32 : i32
    %9 = arith.extui %8 : i1 to i32
    %c0_i32_2 = arith.constant 0 : i32
    %10 = arith.cmpi ne, %9, %c0_i32_2 : i32
    scf.if %10 {
      %c0 = arith.constant 0 : index
      %c0_3 = arith.constant 0 : index
      %11 = vector.load %arg6[%c0, %c0_3] : memref<128x1xf32, #tpu.memory_space<vmem>>, vector<128x1xf32>
      %c0_4 = arith.constant 0 : index
      %c0_5 = arith.constant 0 : index
      %12 = vector.load %arg11[%c0_4, %c0_5] : memref<128x32xf32, #tpu.memory_space<vmem>>, vector<128x32xf32>
      %13 = vector.broadcast %11 : vector<128x1xf32> to vector<128x32xf32>
      %14 = arith.mulf %13, %12 : vector<128x32xf32>
      %c0_6 = arith.constant 0 : index
      %c0_7 = arith.constant 0 : index
      %15 = vector.load %arg7[%c0_6, %c0_7] : memref<1x32xf32, #tpu.memory_space<vmem>>, vector<1x32xf32>
      %16 = vector.broadcast %15 : vector<1x32xf32> to vector<128x32xf32>
      %17 = arith.addf %14, %16 : vector<128x32xf32>
      %cst = arith.constant 0.000000e+00 : f32
      %18 = vector.broadcast %cst : f32 to vector<128x32xf32>
      %19 = arith.maximumf %17, %18 : vector<128x32xf32>
      %20 = arith.truncf %19 : vector<128x32xf32> to vector<128x32xbf16>
      %c0_8 = arith.constant 0 : index
      %c0_9 = arith.constant 0 : index
      %21 = vector.load %arg8[%c0_8, %c0_9] : memref<32x128xbf16, #tpu.memory_space<vmem>>, vector<32x128xbf16>
      %cst_10 = arith.constant dense<0.000000e+00> : vector<128x128xf32>
      %22 = tpu.matmul %20, %21, %cst_10 {dimension_numbers = #tpu.dot_dimension_numbers<[1], [0], [0], [1], [0, 0, 1, 1], [], []>} : vector<128x32xbf16>, vector<32x128xbf16>, vector<128x128xf32> -> vector<128x128xf32>
      %c0_11 = arith.constant 0 : index
      %c0_12 = arith.constant 0 : index
      %23 = vector.load %arg9[%c0_11, %c0_12] : memref<1x128xf32, #tpu.memory_space<vmem>>, vector<1x128xf32>
      %24 = vector.broadcast %23 : vector<1x128xf32> to vector<128x128xf32>
      %25 = arith.addf %22, %24 : vector<128x128xf32>
      %c0_13 = arith.constant 0 : index
      %c0_14 = arith.constant 0 : index
      %26 = vector.load %arg10[%c0_13, %c0_14] : memref<128x128xf32, #tpu.memory_space<vmem>>, vector<128x128xf32>
      tpu.vector_store %arg10[%c0_13, %c0_14], %25 {strides = array<i32>} : memref<128x128xf32, #tpu.memory_space<vmem>>, vector<128x128xf32>,
    } else {
    }
    return
  }
  func.func @transform_0(%arg0: i32, %arg1: i32, %arg2: memref<3xi32, #tpu.memory_space<smem>>, %arg3: memref<3x3xi32, #tpu.memory_space<smem>>) -> (i32, i32) {
    %0 = arith.index_cast %arg0 : i32 to index
    %1 = arith.index_cast %arg1 : i32 to index
    %2 = memref.load %arg3[%0, %1] : memref<3x3xi32, #tpu.memory_space<smem>>
    %c0_i32 = arith.constant 0 : i32
    return %arg0, %2 : i32, i32
  }
  func.func @transform_1(%arg0: i32, %arg1: i32, %arg2: memref<3xi32, #tpu.memory_space<smem>>, %arg3: memref<3x3xi32, #tpu.memory_space<smem>>) -> (i32, i32) {
    %c0_i32 = arith.constant 0 : i32
    %c0_i32_0 = arith.constant 0 : i32
    %c0_i32_1 = arith.constant 0 : i32
    return %c0_i32, %c0_i32_0 : i32, i32
  }
  func.func @transform_2(%arg0: i32, %arg1: i32, %arg2: memref<3xi32, #tpu.memory_space<smem>>, %arg3: memref<3x3xi32, #tpu.memory_space<smem>>) -> (i32, i32) {
    %c0_i32 = arith.constant 0 : i32
    %c0_i32_0 = arith.constant 0 : i32
    return %arg0, %c0_i32 : i32, i32
  }
  func.func @transform_3(%arg0: i32, %arg1: i32, %arg2: memref<3xi32, #tpu.memory_space<smem>>, %arg3: memref<3x3xi32, #tpu.memory_space<smem>>) -> (i32, i32) {
    %c0_i32 = arith.constant 0 : i32
    %c0_i32_0 = arith.constant 0 : i32
    %c0_i32_1 = arith.constant 0 : i32
    return %c0_i32, %c0_i32_0 : i32, i32
  }
  func.func @transform_4(%arg0: i32, %arg1: i32, %arg2: memref<3xi32, #tpu.memory_space<smem>>, %arg3: memref<3x3xi32, #tpu.memory_space<smem>>) -> (i32, i32) {
    %c0_i32 = arith.constant 0 : i32
    %c0_i32_0 = arith.constant 0 : i32
    %c0_i32_1 = arith.constant 0 : i32
    return %c0_i32, %c0_i32_0 : i32, i32
  }
  func.func @transform_5(%arg0: i32, %arg1: i32, %arg2: memref<3xi32, #tpu.memory_space<smem>>, %arg3: memref<3x3xi32, #tpu.memory_space<smem>>) -> (i32, i32) {
    %c0_i32 = arith.constant 0 : i32
    %c0_i32_0 = arith.constant 0 : i32
    %c0_i32_1 = arith.constant 0 : i32
    return %c0_i32, %c0_i32_0 : i32, i32
  }
  func.func @transform_6(%arg0: i32, %arg1: i32, %arg2: memref<3xi32, #tpu.memory_space<smem>>, %arg3: memref<3x3xi32, #tpu.memory_space<smem>>) -> (i32, i32) {
    %c0_i32 = arith.constant 0 : i32
    %c0_i32_0 = arith.constant 0 : i32
    return %arg0, %c0_i32 : i32, i32
  }
}

</mosaic_0001>

<llo_original>
// kernel: net_cell_forward.2
$region0: #{net_cell_forward.2}
  #allocation0 [shape = 'u32[]', space=smem, size = 0x4, offset = 0x4, fixed_abs, tag = 'smem constant byte address 0x4 - core index']
  #allocation1 [shape = 'u32[144,128]{1,0:T(1,128)}', space=vmem, size = 0x12000, scoped, tag = 'internal scratch']
  %s0 = inlined_call_operand.vmem [shape: bf16[384,64], index: 0, kind: input, shape index: {}]
  %s1 = inlined_call_operand.vmem [shape: bf16[64,32], index: 1, kind: input, shape index: {}]
  %s2 = inlined_call_operand.vmem [shape: f32[384,1], index: 2, kind: input, shape index: {}]
  %s3 = inlined_call_operand.vmem [shape: bf16[384,32], index: 3, kind: output, shape index: {}]
  %s4 = sld [smem:[#allocation0]]
  $region45: #{net_cell_forward.2} parent=0
    _
  %s6 = ssub.s32 1, %s4
  %s7 = scalar_select 0, %s6, %s4
  loop: start=0, step=1, limit=5
  $region2: #{net_cell_forward.2} parent=0 // loop_pre_header
    _
  $region3: #{net_cell_forward.2} parent=0 // loop_header
    %s9 = sphi 0, %s13
    %p10 = scmp.ge.s32.totalorder %s9, 5
    %s19 = sphi 0, %s21
    %s22 = sphi 0, %s19
    %s23 = sphi 0, %s22
    %s39 = sphi 0, %s23
    %s43 = sphi 0, %s43
    %s45 = sphi 0, %s43
    %s46 = sphi 0, %s45
    %s60 = sphi 0, %s46
    %s66 = sphi 0, %s68
    %s69 = sphi 0, %s66
    %s70 = sphi 0, %s69
    %s86 = sphi 0, %s70
    %s92 = sphi 0, %s94
    %s95 = sphi 0, %s92
    %s96 = sphi 0, %s95
    %s112 = sphi 0, %s96
  $region4: #{net_cell_forward.2} parent=0 // loop_header_branch
    %12 = sbr.rel (%p10) target = $region8
  $region5: #{net_cell_forward.2} parent=0 // loop_body
    %s14 = ssub.s32 %s9, 1
    %s15 = ssub.s32 %s9, 2
    %s16 = sadd.s32 %s9, 1
    %s17 = ssub.s32 %s9, %s16
    %p18 = scmp.eq.s32.totalorder %s17, 0
    %s20 = sadd.s32 %s19, 1
    %s21 = scalar_select %p18, %s19, %s20
    %p24 = pneg %p18
    %p25 = scmp.eq.s32.totalorder %s9, 2
    %p26 = por %p24, %p25
    %p27 = scmp.ne.s32.totalorder %s19, %s22
    %p28 = scmp.eq.s32.totalorder %s9, 0
    %p29 = por %p27, %p28
    %p30 = scmp.ne.s32.totalorder %s19, %s22
    %p31 = scmp.eq.s32.totalorder %s14, 2
    %p32 = por %p30, %p31
    %p33 = scmp.ne.s32.totalorder %s22, %s23
    %p34 = scmp.eq.s32.totalorder %s14, 0
    %p35 = por %p33, %p34
    %p36 = scmp.ne.s32.totalorder %s22, %s23
    %p37 = scmp.eq.s32.totalorder %s15, 2
    %p38 = por %p36, %p37
    %p40 = scmp.ne.s32.totalorder %s23, %s39
    %p41 = scmp.eq.s32.totalorder %s15, 0
    %p42 = por %p40, %p41
    %s44 = sadd.s32 %s43, 1
    %p47 = scmp.eq.s32.totalorder %s9, 2
    %p48 = scmp.ne.s32.totalorder %s43, %s45
    %p49 = scmp.eq.s32.totalorder %s9, 0
    %p50 = por %p48, %p49
    %p51 = scmp.ne.s32.totalorder %s43, %s45
    %p52 = scmp.eq.s32.totalorder %s14, 2
    %p53 = por %p51, %p52
    %p54 = scmp.ne.s32.totalorder %s45, %s46
    %p55 = scmp.eq.s32.totalorder %s14, 0
    %p56 = por %p54, %p55
    %p57 = scmp.ne.s32.totalorder %s45, %s46
    %p58 = scmp.eq.s32.totalorder %s15, 2
    %p59 = por %p57, %p58
    %p61 = scmp.ne.s32.totalorder %s46, %s60
    %p62 = scmp.eq.s32.totalorder %s15, 0
    %p63 = por %p61, %p62
    %s64 = ssub.s32 %s9, %s16
    %p65 = scmp.eq.s32.totalorder %s64, 0
    %s67 = sadd.s32 %s66, 1
    %s68 = scalar_select %p65, %s66, %s67
    %p71 = pneg %p65
    %p72 = scmp.eq.s32.totalorder %s9, 2
    %p73 = por %p71, %p72
    %p74 = scmp.ne.s32.totalorder %s66, %s69
    %p75 = scmp.eq.s32.totalorder %s9, 0
    %p76 = por %p74, %p75
    %p77 = scmp.ne.s32.totalorder %s66, %s69
    %p78 = scmp.eq.s32.totalorder %s14, 2
    %p79 = por %p77, %p78
    %p80 = scmp.ne.s32.totalorder %s69, %s70
    %p81 = scmp.eq.s32.totalorder %s14, 0
    %p82 = por %p80, %p81
    %p83 = scmp.ne.s32.totalorder %s69, %s70
    %p84 = scmp.eq.s32.totalorder %s15, 2
    %p85 = por %p83, %p84
    %p87 = scmp.ne.s32.totalorder %s70, %s86
    %p88 = scmp.eq.s32.totalorder %s15, 0
    %p89 = por %p87, %p88
    %s90 = ssub.s32 %s9, %s16
    %p91 = scmp.eq.s32.totalorder %s90, 0
    %s93 = sadd.s32 %s92, 1
    %s94 = scalar_select %p91, %s92, %s93
    %p97 = pneg %p91
    %p98 = scmp.eq.s32.totalorder %s9, 2
    %p99 = por %p97, %p98
    %p100 = scmp.ne.s32.totalorder %s92, %s95
    %p101 = scmp.eq.s32.totalorder %s9, 0
    %p102 = por %p100, %p101
    %p103 = scmp.ne.s32.totalorder %s92, %s95
    %p104 = scmp.eq.s32.totalorder %s14, 2
    %p105 = por %p103, %p104
    %p106 = scmp.ne.s32.totalorder %s95, %s96
    %p107 = scmp.eq.s32.totalorder %s14, 0
    %p108 = por %p106, %p107
    %p109 = scmp.ne.s32.totalorder %s95, %s96
    %p110 = scmp.eq.s32.totalorder %s15, 2
    %p111 = por %p109, %p110
    %p113 = scmp.ne.s32.totalorder %s96, %s112
    %p114 = scmp.eq.s32.totalorder %s15, 0
    %p115 = por %p113, %p114
    %p116 = scmp.le.s32.totalorder 1, %s9
    %p117 = scmp.lt.s32.totalorder %s9, 4
    %p118 = pnand %p116, %p117
    %p119 = pneg %p118
    // Predicated region
    $region9: #{net_cell_forward.2} parent=5 // pred_check
      _
    $region10: #{net_cell_forward.2} parent=5 // pred_check_branch
      %121 = sbr.rel (%p118) target = $region12
    $region11: #{net_cell_forward.2} parent=5 // pred_region
      %s122 = ssub.s32 %s9, 1
      // Predicated region
      $region13: #{net_cell_forward.2} parent=11 // pred_check
        %p123 = pneg %p56
      $region14: #{net_cell_forward.2} parent=11 // pred_check_branch
        %125 = sbr.rel (%p123) target = $region16
      $region15: #{net_cell_forward.2} parent=11 // pred_region
        _
      $region16: #{net_cell_forward.2} parent=11 // pred_fallthru
        _
    $region12: #{net_cell_forward.2} parent=5 // pred_fallthru
      _
    %p126 = scmp.lt.s32.totalorder %s9, 3
    // Predicated region
    $region17: #{net_cell_forward.2} parent=5 // pred_check
      %p127 = pneg %p126
    $region18: #{net_cell_forward.2} parent=5 // pred_check_branch
      %129 = sbr.rel (%p127) target = $region20
    $region19: #{net_cell_forward.2} parent=5 // pred_region
      // Predicated region
      $region21: #{net_cell_forward.2} parent=19 // pred_check
        %p130 = pneg %p29
      $region22: #{net_cell_forward.2} parent=19 // pred_check_branch
        %132 = sbr.rel (%p130) target = $region24
      $region23: #{net_cell_forward.2} parent=19 // pred_region
        %s133 = smul.u32 16, %s9
        %p134 = scmp.lt.s32.totalorder %s133, 47
        %s135 = scalar_select %p134, %s133, 47
        %s136 = smul.addr %s135, 4
        %s137 = scalar_lea.vmem %s0, %s136
        %s138 = smul.u32 16, %s9
      $region24: #{net_cell_forward.2} parent=19 // pred_fallthru
        _
      // Predicated region
      $region25: #{net_cell_forward.2} parent=19 // pred_check
        %p139 = pneg %p76
      $region26: #{net_cell_forward.2} parent=19 // pred_check_branch
        %141 = sbr.rel (%p139) target = $region28
      $region27: #{net_cell_forward.2} parent=19 // pred_region
        %s142 = smul.u32 16, %s9
        %p143 = scmp.lt.s32.totalorder %s142, 47
        %s144 = scalar_select %p143, %s142, 47
        %s145 = smul.addr %s144, 8
        %s146 = scalar_lea.vmem %s2, %s145
        %s147 = smul.u32 16, %s9
      $region28: #{net_cell_forward.2} parent=19 // pred_fallthru
        _
    $region20: #{net_cell_forward.2} parent=5 // pred_fallthru
      _
    %p148 = scmp.le.s32.totalorder 1, %s9
    %p149 = scmp.lt.s32.totalorder %s9, 4
    %p150 = pnand %p148, %p149
    %p151 = pneg %p150
    // Predicated region
    $region29: #{net_cell_forward.2} parent=5 // pred_check
      _
    $region30: #{net_cell_forward.2} parent=5 // pred_check_branch
      %153 = sbr.rel (%p150) target = $region32
    $region31: #{net_cell_forward.2} parent=5 // pred_region
      %s154 = ssub.s32 %s9, 1
      %s155 = smul.u32 16, %s14
      %p156 = scmp.lt.s32.totalorder %s155, 47
      %s157 = scalar_select %p156, %s155, 47
      %s158 = smul.addr %s157, 4
      %s159 = scalar_lea.vmem %s0, %s158
      %p160 = pneg %p35
      %p161 = pneg %p32
      %p162 = pneg %p56
      %p163 = pneg %p53
      %s164 = smul.u32 16, %s14
      %p165 = scmp.lt.s32.totalorder %s164, 47
      %s166 = scalar_select %p165, %s164, 47
      %s167 = smul.addr %s166, 8
      %s168 = scalar_lea.vmem %s2, %s167
      %p169 = pneg %p82
      %p170 = pneg %p79
      %p171 = pneg %p108
      %p172 = pneg %p105
      %s173 = smul.u32 16, %s14
      %p174 = scmp.lt.s32.totalorder %s173, 47
      %s175 = scalar_select %p174, %s173, 47
      %s176 = smul.addr %s175, 4
      %s177 = scalar_lea.vmem %s3, %s176
      %s178 = smul.u32 16, %s14
      %p179 = scmp.lt.s32.totalorder %s178, 47
      %s180 = scalar_select %p179, %s178, 47
      %s181 = smul.addr %s180, 4
      %s182 = scalar_lea.vmem %s0, %s181
      %s183 = smul.u32 16, %s14
      %s184 = smul.u32 16, %s14
      %p185 = scmp.lt.s32.totalorder %s184, 47
      %s186 = scalar_select %p185, %s184, 47
      %s187 = smul.addr %s186, 8
      %s188 = scalar_lea.vmem %s2, %s187
      %s189 = smul.u32 16, %s14
      %s190 = smul.u32 16, %s14
      %p191 = scmp.lt.s32.totalorder %s190, 47
      %s192 = scalar_select %p191, %s190, 47
      %s193 = smul.addr %s192, 4
      %s194 = scalar_lea.vmem %s3, %s193
      %s195 = smul.u32 16, %s14
      %v197 = vld [vmem:[%s182] sm:$0xf]
      %v198 = vld [vmem:[%s182 + $0x4] sm:$0xf]
      %v199 = vld [vmem:[%s182 + $0x8] sm:$0xf]
      %v200 = vld [vmem:[%s182 + $0xc] sm:$0xf]
      %v201 = vld [vmem:[%s182 + $0x10] sm:$0xf]
      %v202 = vld [vmem:[%s182 + $0x14] sm:$0xf]
      %v203 = vld [vmem:[%s182 + $0x18] sm:$0xf]
      %v204 = vld [vmem:[%s182 + $0x1c] sm:$0xf]
      %v205 = vld [vmem:[%s182 + $0x20] sm:$0xf]
      %v206 = vld [vmem:[%s182 + $0x24] sm:$0xf]
      %v207 = vld [vmem:[%s182 + $0x28] sm:$0xf]
      %v208 = vld [vmem:[%s182 + $0x2c] sm:$0xf]
      %v209 = vld [vmem:[%s182 + $0x30] sm:$0xf]
      %v210 = vld [vmem:[%s182 + $0x34] sm:$0xf]
      %v211 = vld [vmem:[%s182 + $0x38] sm:$0xf]
      %v212 = vld [vmem:[%s182 + $0x3c] sm:$0xf]
      %v213 = vld [vmem:[%s1] sm:$0xf]
      %v214 = vld [vmem:[%s1 + $0x4] sm:$0xf]
      %v215 = vld [vmem:[%s1 + $0x8] sm:$0xf]
      %v216 = vld [vmem:[%s1 + $0xc] sm:$0xf]
      %v217 = vld [vmem:[%s1 + $0x10] sm:$0xf]
      %v218 = vld [vmem:[%s1 + $0x14] sm:$0xf]
      %v219 = vld [vmem:[%s1 + $0x18] sm:$0xf]
      %v220 = vld [vmem:[%s1 + $0x1c] sm:$0xf]
      %v237 = vunpack.c.l.b16 %v197
      %v238 = vunpack.c.l.b16 %v198
      %v239 = vunpack.c.l.b16 %v199
      %v240 = vunpack.c.l.b16 %v200
      %v241 = vunpack.c.l.b16 %v201
      %v242 = vunpack.c.l.b16 %v202
      %v243 = vunpack.c.l.b16 %v203
      %v244 = vunpack.c.l.b16 %v204
      %v245 = vunpack.c.l.b16 %v205
      %v246 = vunpack.c.l.b16 %v206
      %v247 = vunpack.c.l.b16 %v207
      %v248 = vunpack.c.l.b16 %v208
      %v249 = vunpack.c.l.b16 %v209
      %v250 = vunpack.c.l.b16 %v210
      %v251 = vunpack.c.l.b16 %v211
      %v252 = vunpack.c.l.b16 %v212
      %v253 = vpack.c.b16 %v238, %v237
      %v254 = vpack.c.b16 %v240, %v239
      %v255 = vpack.c.b16 %v242, %v241
      %v256 = vpack.c.b16 %v244, %v243
      %v257 = vpack.c.b16 %v246, %v245
      %v258 = vpack.c.b16 %v248, %v247
      %v259 = vpack.c.b16 %v250, %v249
      %v260 = vpack.c.b16 %v252, %v251
      %v269 = vunpack.c.l.b16 %v213
      %v270 = vunpack.c.l.b16 %v214
      %v271 = vunpack.c.l.b16 %v215
      %v272 = vunpack.c.l.b16 %v216
      %v273 = vunpack.c.l.b16 %v217
      %v274 = vunpack.c.l.b16 %v218
      %v275 = vunpack.c.l.b16 %v219
      %v276 = vunpack.c.l.b16 %v220
      %v277 = vpack.c.b16 %v270, %v269
      %v278 = vpack.c.b16 %v272, %v271
      %v279 = vpack.c.b16 %v274, %v273
      %v280 = vpack.c.b16 %v276, %v275
      %vm285 = vcmask 523264
      %v287 = vsel %vm285, %v253, 0
      %v290 = vsel %vm285, %v254, 0
      %v293 = vsel %vm285, %v255, 0
      %v296 = vsel %vm285, %v256, 0
      %v299 = vsel %vm285, %v257, 0
      %v302 = vsel %vm285, %v258, 0
      %v305 = vsel %vm285, %v259, 0
      %v308 = vsel %vm285, %v260, 0
      %310 = vmatprep.subr.bf16.mxu0 0
      %311 = vmatpush1.bf16.msra.mxu0 %v277
      %312 = vmatprep.subr.bf16.mxu0 0
      %313 = vmatpush1.bf16.msra.mxu0 %v278
      %314 = vmatprep.subr.bf16.mxu0 0
      %315 = vmatpush1.bf16.msra.mxu0 %v279
      %316 = vmatprep.subr.bf16.mxu0 0
      %317 = vmatpush1.bf16.msra.mxu0 %v280
      %318 = vmatprep.subr.bf16.mxu0 0
      %319 = vmatpush1.bf16.msra.mxu0 0
      %320 = vmatprep.subr.bf16.mxu0 0
      %321 = vmatpush1.bf16.msra.mxu0 0
      %322 = vmatprep.subr.bf16.mxu0 0
      %323 = vmatpush1.bf16.msra.mxu0 0
      %324 = vmatprep.subr.bf16.mxu0 0
      %325 = vmatpush1.bf16.msra.mxu0 0
      %326 = vmatprep.subr.bf16.mxu0 0
      %327 = vmatpush1.bf16.msra.mxu0 0
      %328 = vmatprep.subr.bf16.mxu0 0
      %329 = vmatpush1.bf16.msra.mxu0 0
      %330 = vmatprep.subr.bf16.mxu0 0
      %331 = vmatpush1.bf16.msra.mxu0 0
      %332 = vmatprep.subr.bf16.mxu0 0
      %333 = vmatpush1.bf16.msra.mxu0 0
      %334 = vmatprep.subr.bf16.mxu0 0
      %335 = vmatpush1.bf16.msra.mxu0 0
      %336 = vmatprep.subr.bf16.mxu0 0
      %337 = vmatpush1.bf16.msra.mxu0 0
      %338 = vmatprep.subr.bf16.mxu0 0
      %339 = vmatpush1.bf16.msra.mxu0 0
      %340 = vmatprep.subr.bf16.mxu0 0
      %341 = vmatpush1.bf16.msra.mxu0 0
      %342 = vmatprep.mubr.bf16.mxu0 0
      %343 = vmatmul.mubr.bf16.gmra.mrb[0].mxu0 %v287
      %v344 = vpop.f32.mrb[0].mxu0
      %v345 = vadd.f32 0.0, %v344
      %v346 = vpop.f32.mrb[0].mxu0
      %v347 = vpop.f32.mrb[0].mxu0
      %v348 = vadd.f32 0.0, %v347
      %v349 = vpop.f32.mrb[0].mxu0
      %350 = vmatprep.mubr.bf16.mxu0 0
      %351 = vmatmul.mubr.bf16.gmra.mrb[0].mxu0 %v290
      %v352 = vpop.f32.mrb[0].mxu0
      %v353 = vadd.f32 0.0, %v352
      %v354 = vpop.f32.mrb[0].mxu0
      %v355 = vpop.f32.mrb[0].mxu0
      %v356 = vadd.f32 0.0, %v355
      %v357 = vpop.f32.mrb[0].mxu0
      %358 = vmatprep.mubr.bf16.mxu0 0
      %359 = vmatmul.mubr.bf16.gmra.mrb[0].mxu0 %v293
      %v360 = vpop.f32.mrb[0].mxu0
      %v361 = vadd.f32 0.0, %v360
      %v362 = vpop.f32.mrb[0].mxu0
      %v363 = vpop.f32.mrb[0].mxu0
      %v364 = vadd.f32 0.0, %v363
      %v365 = vpop.f32.mrb[0].mxu0
      %366 = vmatprep.mubr.bf16.mxu0 0
      %367 = vmatmul.mubr.bf16.gmra.mrb[0].mxu0 %v296
      %v368 = vpop.f32.mrb[0].mxu0
      %v369 = vadd.f32 0.0, %v368
      %v370 = vpop.f32.mrb[0].mxu0
      %v371 = vpop.f32.mrb[0].mxu0
      %v372 = vadd.f32 0.0, %v371
      %v373 = vpop.f32.mrb[0].mxu0
      %374 = vmatprep.mubr.bf16.mxu0 0
      %375 = vmatmul.mubr.bf16.gmra.mrb[0].mxu0 %v299
      %v376 = vpop.f32.mrb[0].mxu0
      %v377 = vadd.f32 0.0, %v376
      %v378 = vpop.f32.mrb[0].mxu0
      %v379 = vpop.f32.mrb[0].mxu0
      %v380 = vadd.f32 0.0, %v379
      %v381 = vpop.f32.mrb[0].mxu0
      %382 = vmatprep.mubr.bf16.mxu0 0
      %383 = vmatmul.mubr.bf16.gmra.mrb[0].mxu0 %v302
      %v384 = vpop.f32.mrb[0].mxu0
      %v385 = vadd.f32 0.0, %v384
      %v386 = vpop.f32.mrb[0].mxu0
      %v387 = vpop.f32.mrb[0].mxu0
      %v388 = vadd.f32 0.0, %v387
      %v389 = vpop.f32.mrb[0].mxu0
      %390 = vmatprep.mubr.bf16.mxu0 0
      %391 = vmatmul.mubr.bf16.gmra.mrb[0].mxu0 %v305
      %v392 = vpop.f32.mrb[0].mxu0
      %v393 = vadd.f32 0.0, %v392
      %v394 = vpop.f32.mrb[0].mxu0
      %v395 = vpop.f32.mrb[0].mxu0
      %v396 = vadd.f32 0.0, %v395
      %v397 = vpop.f32.mrb[0].mxu0
      %398 = vmatprep.mubr.bf16.mxu0 0
      %399 = vmatmul.mubr.bf16.gmra.mrb[0].mxu0 %v308
      %v400 = vpop.f32.mrb[0].mxu0
      %v401 = vadd.f32 0.0, %v400
      %v402 = vpop.f32.mrb[0].mxu0
      %v403 = vpop.f32.mrb[0].mxu0
      %v404 = vadd.f32 0.0, %v403
      %v405 = vpop.f32.mrb[0].mxu0
      %406 = vdwg.mxu0
      %v407 = vld [vmem:[%s188] sm:$0xff]
      %v408 = vld [vmem:[%s188 + $0x8] sm:$0xff]
      %v409 = vld [vmem:[%s188 + $0x10] sm:$0xff]
      %v410 = vld [vmem:[%s188 + $0x18] sm:$0xff]
      %v411 = vld [vmem:[%s188 + $0x20] sm:$0xff]
      %v412 = vld [vmem:[%s188 + $0x28] sm:$0xff]
      %v413 = vld [vmem:[%s188 + $0x30] sm:$0xff]
      %v414 = vld [vmem:[%s188 + $0x38] sm:$0xff]
      %v415 = vld [vmem:[%s188 + $0x40] sm:$0xff]
      %v416 = vld [vmem:[%s188 + $0x48] sm:$0xff]
      %v417 = vld [vmem:[%s188 + $0x50] sm:$0xff]
      %v418 = vld [vmem:[%s188 + $0x58] sm:$0xff]
      %v419 = vld [vmem:[%s188 + $0x60] sm:$0xff]
      %v420 = vld [vmem:[%s188 + $0x68] sm:$0xff]
      %v421 = vld [vmem:[%s188 + $0x70] sm:$0xff]
      %v422 = vld [vmem:[%s188 + $0x78] sm:$0xff]
      %424 = vset.pattern.permute.xlu0 0
      %425 = vperm.xlu0 %424, %v407
      %v426 = vpop.permute.xlu0 %425
      %429 = vset.pattern.permute.xlu0 0
      %430 = vperm.xlu0 %429, %v408
      %v431 = vpop.permute.xlu0 %430
      %434 = vset.pattern.permute.xlu0 0
      %435 = vperm.xlu0 %434, %v409
      %v436 = vpop.permute.xlu0 %435
      %439 = vset.pattern.permute.xlu0 0
      %440 = vperm.xlu0 %439, %v410
      %v441 = vpop.permute.xlu0 %440
      %444 = vset.pattern.permute.xlu0 0
      %445 = vperm.xlu0 %444, %v411
      %v446 = vpop.permute.xlu0 %445
      %449 = vset.pattern.permute.xlu0 0
      %450 = vperm.xlu0 %449, %v412
      %v451 = vpop.permute.xlu0 %450
      %454 = vset.pattern.permute.xlu0 0
      %455 = vperm.xlu0 %454, %v413
      %v456 = vpop.permute.xlu0 %455
      %459 = vset.pattern.permute.xlu0 0
      %460 = vperm.xlu0 %459, %v414
      %v461 = vpop.permute.xlu0 %460
      %464 = vset.pattern.permute.xlu0 0
      %465 = vperm.xlu0 %464, %v415
      %v466 = vpop.permute.xlu0 %465
      %469 = vset.pattern.permute.xlu0 0
      %470 = vperm.xlu0 %469, %v416
      %v471 = vpop.permute.xlu0 %470
      %474 = vset.pattern.permute.xlu0 0
      %475 = vperm.xlu0 %474, %v417
      %v476 = vpop.permute.xlu0 %475
      %479 = vset.pattern.permute.xlu0 0
      %480 = vperm.xlu0 %479, %v418
      %v481 = vpop.permute.xlu0 %480
      %484 = vset.pattern.permute.xlu0 0
      %485 = vperm.xlu0 %484, %v419
      %v486 = vpop.permute.xlu0 %485
      %489 = vset.pattern.permute.xlu0 0
      %490 = vperm.xlu0 %489, %v420
      %v491 = vpop.permute.xlu0 %490
      %494 = vset.pattern.permute.xlu0 0
      %495 = vperm.xlu0 %494, %v421
      %v496 = vpop.permute.xlu0 %495
      %499 = vset.pattern.permute.xlu0 0
      %500 = vperm.xlu0 %499, %v422
      %v501 = vpop.permute.xlu0 %500
      %v503 = vmul.f32 %v426, %v345
      %v504 = vmul.f32 %v431, %v348
      %v505 = vmul.f32 %v436, %v353
      %v506 = vmul.f32 %v441, %v356
      %v507 = vmul.f32 %v446, %v361
      %v508 = vmul.f32 %v451, %v364
      %v509 = vmul.f32 %v456, %v369
      %v510 = vmul.f32 %v461, %v372
      %v511 = vmul.f32 %v466, %v377
      %v512 = vmul.f32 %v471, %v380
      %v513 = vmul.f32 %v476, %v385
      %v514 = vmul.f32 %v481, %v388
      %v515 = vmul.f32 %v486, %v393
      %v516 = vmul.f32 %v491, %v396
      %v517 = vmul.f32 %v496, %v401
      %v518 = vmul.f32 %v501, %v404
      %v519 = vpack.c.bf16 %v504, %v503
      %v520 = vpack.c.bf16 %v506, %v505
      %v521 = vpack.c.bf16 %v508, %v507
      %v522 = vpack.c.bf16 %v510, %v509
      %v523 = vpack.c.bf16 %v512, %v511
      %v524 = vpack.c.bf16 %v514, %v513
      %v525 = vpack.c.bf16 %v516, %v515
      %v526 = vpack.c.bf16 %v518, %v517
      %v535 = vunpack.c.l.b16 %v519
      %v536 = vunpack.c.h.b16 %v519
      %v537 = vunpack.c.l.b16 %v520
      %v538 = vunpack.c.h.b16 %v520
      %v539 = vunpack.c.l.b16 %v521
      %v540 = vunpack.c.h.b16 %v521
      %v541 = vunpack.c.l.b16 %v522
      %v542 = vunpack.c.h.b16 %v522
      %v543 = vunpack.c.l.b16 %v523
      %v544 = vunpack.c.h.b16 %v523
      %v545 = vunpack.c.l.b16 %v524
      %v546 = vunpack.c.h.b16 %v524
      %v547 = vunpack.c.l.b16 %v525
      %v548 = vunpack.c.h.b16 %v525
      %v549 = vunpack.c.l.b16 %v526
      %v550 = vunpack.c.h.b16 %v526
      %v551 = vpack.c.b16 %v535, %v535
      %v552 = vpack.c.b16 %v536, %v536
      %v553 = vpack.c.b16 %v537, %v537
      %v554 = vpack.c.b16 %v538, %v538
      %v555 = vpack.c.b16 %v539, %v539
      %v556 = vpack.c.b16 %v540, %v540
      %v557 = vpack.c.b16 %v541, %v541
      %v558 = vpack.c.b16 %v542, %v542
      %v559 = vpack.c.b16 %v543, %v543
      %v560 = vpack.c.b16 %v544, %v544
      %v561 = vpack.c.b16 %v545, %v545
      %v562 = vpack.c.b16 %v546, %v546
      %v563 = vpack.c.b16 %v547, %v547
      %v564 = vpack.c.b16 %v548, %v548
      %v565 = vpack.c.b16 %v549, %v549
      %v566 = vpack.c.b16 %v550, %v550
      %vm583 = vcmask 257024
      %584 = vst.msk [vmem:[%s194] sm:$0xf] %vm583, %v551
      %585 = vst.msk [vmem:[%s194 + $0x4] sm:$0xf] %vm583, %v552
      %586 = vst.msk [vmem:[%s194 + $0x8] sm:$0xf] %vm583, %v553
      %587 = vst.msk [vmem:[%s194 + $0xc] sm:$0xf] %vm583, %v554
      %588 = vst.msk [vmem:[%s194 + $0x10] sm:$0xf] %vm583, %v555
      %589 = vst.msk [vmem:[%s194 + $0x14] sm:$0xf] %vm583, %v556
      %590 = vst.msk [vmem:[%s194 + $0x18] sm:$0xf] %vm583, %v557
      %591 = vst.msk [vmem:[%s194 + $0x1c] sm:$0xf] %vm583, %v558
      %592 = vst.msk [vmem:[%s194 + $0x20] sm:$0xf] %vm583, %v559
      %593 = vst.msk [vmem:[%s194 + $0x24] sm:$0xf] %vm583, %v560
      %594 = vst.msk [vmem:[%s194 + $0x28] sm:$0xf] %vm583, %v561
      %595 = vst.msk [vmem:[%s194 + $0x2c] sm:$0xf] %vm583, %v562
      %596 = vst.msk [vmem:[%s194 + $0x30] sm:$0xf] %vm583, %v563
      %597 = vst.msk [vmem:[%s194 + $0x34] sm:$0xf] %vm583, %v564
      %598 = vst.msk [vmem:[%s194 + $0x38] sm:$0xf] %vm583, %v565
      %599 = vst.msk [vmem:[%s194 + $0x3c] sm:$0xf] %vm583, %v566
      %s600 = smul.u32 16, %s14
      %p601 = scmp.lt.s32.totalorder %s600, 47
      %s602 = scalar_select %p601, %s600, 47
      %s603 = smul.addr %s602, 4
      %s604 = scalar_lea.vmem %s3, %s603
      // Predicated region
      $region33: #{net_cell_forward.2} parent=31 // pred_check
        %p605 = pneg %p105
      $region34: #{net_cell_forward.2} parent=31 // pred_check_branch
        %607 = sbr.rel (%p605) target = $region36
      $region35: #{net_cell_forward.2} parent=31 // pred_region
        %s608 = smul.u32 16, %s14
      $region36: #{net_cell_forward.2} parent=31 // pred_fallthru
        _
    $region32: #{net_cell_forward.2} parent=5 // pred_fallthru
      _
    %p609 = scmp.le.s32.totalorder 2, %s9
    // Predicated region
    $region37: #{net_cell_forward.2} parent=5 // pred_check
      %p610 = pneg %p609
    $region38: #{net_cell_forward.2} parent=5 // pred_check_branch
      %612 = sbr.rel (%p610) target = $region40
    $region39: #{net_cell_forward.2} parent=5 // pred_region
      %s613 = ssub.s32 %s9, 2
      // Predicated region
      $region41: #{net_cell_forward.2} parent=39 // pred_check
        %p614 = pneg %p111
      $region42: #{net_cell_forward.2} parent=39 // pred_check_branch
        %616 = sbr.rel (%p614) target = $region44
      $region43: #{net_cell_forward.2} parent=39 // pred_region
        %s617 = smul.u32 16, %s15
        %p618 = scmp.lt.s32.totalorder %s617, 47
        %s619 = scalar_select %p618, %s617, 47
        %s620 = smul.addr %s619, 4
        %s621 = scalar_lea.vmem %s3, %s620
      $region44: #{net_cell_forward.2} parent=39 // pred_fallthru
        _
    $region40: #{net_cell_forward.2} parent=5 // pred_fallthru
      _
  $region6: #{net_cell_forward.2} parent=0 // loop_footer
    %s13 = sadd.s32 1, %s9
  $region7: #{net_cell_forward.2} parent=0 // loop_footer_branch
    %8 = sbr.rel target = $region3
  $region8: #{net_cell_forward.2} parent=0 // loop_exit
    _

// kernel: net_cell_forward.3
$region0: #{net_cell_forward.3}
  #allocation0 [shape = 'u32[]', space=smem, size = 0x4, offset = 0x4, fixed_abs, tag = 'smem constant byte address 0x4 - core index']
  #allocation1 [shape = 'u32[144,128]{1,0:T(1,128)}', space=vmem, size = 0x12000, scoped, tag = 'internal scratch']
  #allocation2 [shape = 'f32[128,32]{1,0:T(8,128)}', space=vmem, size = 0x10000, scoped, tag = 'scratch operand']
  #allocation3 [shape = 's32[1]{0}', space=sflag, size = 0x4, scoped, tag = 'scoped memory for net_cell_forward.3']
  #allocation4 [shape = 'u8[512]{0}', space=smem, size = 0x200, scoped, tag = 'prefetched SMEM operand 0']
  #allocation5 [shape = 'u8[2048]{0}', space=smem, size = 0x800, scoped, tag = 'prefetched SMEM operand 1']
  %s0 = inlined_call_operand.vmem [shape: s32[3], index: 0, kind: input, shape index: {}]
  %s1 = inlined_call_operand.vmem [shape: s32[3,3], index: 1, kind: input, shape index: {}]
  %s2 = inlined_call_operand.vmem [shape: s8[384,384], index: 2, kind: input, shape index: {}]
  %s3 = inlined_call_operand.vmem [shape: bf16[384,32], index: 3, kind: input, shape index: {}]
  %s4 = inlined_call_operand.vmem [shape: f32[384,1], index: 4, kind: input, shape index: {}]
  %s5 = inlined_call_operand.vmem [shape: f32[1,32], index: 5, kind: input, shape index: {}]
  %s6 = inlined_call_operand.vmem [shape: bf16[32,128], index: 6, kind: input, shape index: {}]
  %s7 = inlined_call_operand.vmem [shape: f32[1,128], index: 7, kind: input, shape index: {}]
  %s8 = inlined_call_operand.vmem [shape: f32[384,128], index: 8, kind: output, shape index: {}]
  %s9 = sld [smem:[#allocation0]]
  $region110: #{net_cell_forward.3} parent=0
    _
  %s11 = ssub.s32 1, %s9
  %s12 = scalar_select 0, %s11, %s9
  %s13 = sshll.u32 %s0, 4
  %s14 = int_to_ptr.vmem [resolvable:$true] %s13
  %16 = dma.vmem_to_smem %s14, 16, [#allocation4], [#allocation3]
  %s17 = sshll.u32 %s1, 4
  %s18 = int_to_ptr.vmem [resolvable:$true] %s17
  %20 = dma.vmem_to_smem %s18, 64, [#allocation5], [#allocation3]
  %21 = dma.done [#allocation3], 80
  %22 = sfence
  $region1: #{net_cell_forward.3} parent=0
    #allocation6 [shape = 'u8[32768]{0}', space=vmem, size = 0x8000, scoped, tag = 'input window, operand 2']
    loop: start=0, step=1, limit=11
    $region2: #{net_cell_forward.3} parent=1 // loop_pre_header
      _
    $region3: #{net_cell_forward.3} parent=1 // loop_header
      %s24 = sphi 0, %s28
      %p25 = scmp.ge.s32.totalorder %s24, 11
      %s31 = sphi 0, %s43
      %s32 = sphi 0, %s39
      %s33 = sphi 0, %s31
      %s34 = sphi 0, %s32
      %s35 = sphi 0, %s33
      %s36 = sphi 0, %s34
      %s64 = sphi 0, %s66
      %s67 = sphi 0, %s64
      %s68 = sphi 0, %s67
      %s84 = sphi 0, %s68
      %s88 = sphi 0, %s88
      %s90 = sphi 0, %s88
      %s91 = sphi 0, %s90
      %s105 = sphi 0, %s91
      %s111 = sphi 0, %s113
      %s114 = sphi 0, %s111
      %s115 = sphi 0, %s114
      %s131 = sphi 0, %s115
      %s135 = sphi 0, %s135
      %s137 = sphi 0, %s135
      %s138 = sphi 0, %s137
      %s152 = sphi 0, %s138
      %s156 = sphi 0, %s156
      %s158 = sphi 0, %s156
      %s159 = sphi 0, %s158
      %s173 = sphi 0, %s159
      %s177 = sphi 0, %s177
      %s179 = sphi 0, %s177
      %s180 = sphi 0, %s179
      %s194 = sphi 0, %s180
      %s200 = sphi 0, %s202
      %s203 = sphi 0, %s200
      %s204 = sphi 0, %s203
      %s220 = sphi 0, %s204
    $region4: #{net_cell_forward.3} parent=1 // loop_header_branch
      %27 = sbr.rel (%p25) target = $region8
    $region5: #{net_cell_forward.3} parent=1 // loop_body
      %s29 = ssub.s32 %s24, 1
      %s30 = ssub.s32 %s24, 2
      %s37 = sadd.s32 1, %s32
      %p38 = scmp.ge.s32.totalorder %s37, 3
      %s39 = scalar_select %p38, 0, %s37
      %s40 = sadd.s32 1, %s31
      %s41 = scalar_select %p38, %s40, %s31
      %p42 = scmp.ge.s32.totalorder %s41, 3
      %s43 = scalar_select %p42, 0, %s41
      %s44 = sshra.s32 %s32, 7
      %s45 = sand.u32 %s32, 127
      %s46 = sadd.s32 %s44, %s31
      %s47 = smul.u32 %s46, 128
      %s48 = sshra.s32 %s32, 7
      %s49 = sand.u32 %s32, 127
      %s50 = sadd.s32 %s47, %s49
      %s51 = sld [smem:[#allocation5 + %s50]]
      %s52 = sshra.s32 %s39, 7
      %s53 = sand.u32 %s39, 127
      %s54 = sadd.s32 %s52, %s43
      %s55 = smul.u32 %s54, 128
      %s56 = sshra.s32 %s39, 7
      %s57 = sand.u32 %s39, 127
      %s58 = sadd.s32 %s55, %s57
      %s59 = sld [smem:[#allocation5 + %s58]]
      %s60 = ssub.s32 %s31, %s43
      %s61 = ssub.s32 %s51, %s59
      %s62 = sor.u32 %s60, %s61
      %p63 = scmp.eq.s32.totalorder %s62, 0
      %s65 = sadd.s32 %s64, 1
      %s66 = scalar_select %p63, %s64, %s65
      %p69 = pneg %p63
      %p70 = scmp.eq.s32.totalorder %s24, 8
      %p71 = por %p69, %p70
      %p72 = scmp.ne.s32.totalorder %s64, %s67
      %p73 = scmp.eq.s32.totalorder %s24, 0
      %p74 = por %p72, %p73
      %p75 = scmp.ne.s32.totalorder %s64, %s67
      %p76 = scmp.eq.s32.totalorder %s29, 8
      %p77 = por %p75, %p76
      %p78 = scmp.ne.s32.totalorder %s67, %s68
      %p79 = scmp.eq.s32.totalorder %s29, 0
      %p80 = por %p78, %p79
      %p81 = scmp.ne.s32.totalorder %s67, %s68
      %p82 = scmp.eq.s32.totalorder %s30, 8
      %p83 = por %p81, %p82
      %p85 = scmp.ne.s32.totalorder %s68, %s84
      %p86 = scmp.eq.s32.totalorder %s30, 0
      %p87 = por %p85, %p86
      %s89 = sadd.s32 %s88, 1
      %p92 = scmp.eq.s32.totalorder %s24, 8
      %p93 = scmp.ne.s32.totalorder %s88, %s90
      %p94 = scmp.eq.s32.totalorder %s24, 0
      %p95 = por %p93, %p94
      %p96 = scmp.ne.s32.totalorder %s88, %s90
      %p97 = scmp.eq.s32.totalorder %s29, 8
      %p98 = por %p96, %p97
      %p99 = scmp.ne.s32.totalorder %s90, %s91
      %p100 = scmp.eq.s32.totalorder %s29, 0
      %p101 = por %p99, %p100
      %p102 = scmp.ne.s32.totalorder %s90, %s91
      %p103 = scmp.eq.s32.totalorder %s30, 8
      %p104 = por %p102, %p103
      %p106 = scmp.ne.s32.totalorder %s91, %s105
      %p107 = scmp.eq.s32.totalorder %s30, 0
      %p108 = por %p106, %p107
      %s109 = ssub.s32 %s31, %s43
      %p110 = scmp.eq.s32.totalorder %s109, 0
      %s112 = sadd.s32 %s111, 1
      %s113 = scalar_select %p110, %s111, %s112
      %p116 = pneg %p110
      %p117 = scmp.eq.s32.totalorder %s24, 8
      %p118 = por %p116, %p117
      %p119 = scmp.ne.s32.totalorder %s111, %s114
      %p120 = scmp.eq.s32.totalorder %s24, 0
      %p121 = por %p119, %p120
      %p122 = scmp.ne.s32.totalorder %s111, %s114
      %p123 = scmp.eq.s32.totalorder %s29, 8
      %p124 = por %p122, %p123
      %p125 = scmp.ne.s32.totalorder %s114, %s115
      %p126 = scmp.eq.s32.totalorder %s29, 0
      %p127 = por %p125, %p126
      %p128 = scmp.ne.s32.totalorder %s114, %s115
      %p129 = scmp.eq.s32.totalorder %s30, 8
      %p130 = por %p128, %p129
      %p132 = scmp.ne.s32.totalorder %s115, %s131
      %p133 = scmp.eq.s32.totalorder %s30, 0
      %p134 = por %p132, %p133
      %s136 = sadd.s32 %s135, 1
      %p139 = scmp.eq.s32.totalorder %s24, 8
      %p140 = scmp.ne.s32.totalorder %s135, %s137
      %p141 = scmp.eq.s32.totalorder %s24, 0
      %p142 = por %p140, %p141
      %p143 = scmp.ne.s32.totalorder %s135, %s137
      %p144 = scmp.eq.s32.totalorder %s29, 8
      %p145 = por %p143, %p144
      %p146 = scmp.ne.s32.totalorder %s137, %s138
      %p147 = scmp.eq.s32.totalorder %s29, 0
      %p148 = por %p146, %p147
      %p149 = scmp.ne.s32.totalorder %s137, %s138
      %p150 = scmp.eq.s32.totalorder %s30, 8
      %p151 = por %p149, %p150
      %p153 = scmp.ne.s32.totalorder %s138, %s152
      %p154 = scmp.eq.s32.totalorder %s30, 0
      %p155 = por %p153, %p154
      %s157 = sadd.s32 %s156, 1
      %p160 = scmp.eq.s32.totalorder %s24, 8
      %p161 = scmp.ne.s32.totalorder %s156, %s158
      %p162 = scmp.eq.s32.totalorder %s24, 0
      %p163 = por %p161, %p162
      %p164 = scmp.ne.s32.totalorder %s156, %s158
      %p165 = scmp.eq.s32.totalorder %s29, 8
      %p166 = por %p164, %p165
      %p167 = scmp.ne.s32.totalorder %s158, %s159
      %p168 = scmp.eq.s32.totalorder %s29, 0
      %p169 = por %p167, %p168
      %p170 = scmp.ne.s32.totalorder %s158, %s159
      %p171 = scmp.eq.s32.totalorder %s30, 8
      %p172 = por %p170, %p171
      %p174 = scmp.ne.s32.totalorder %s159, %s173
      %p175 = scmp.eq.s32.totalorder %s30, 0
      %p176 = por %p174, %p175
      %s178 = sadd.s32 %s177, 1
      %p181 = scmp.eq.s32.totalorder %s24, 8
      %p182 = scmp.ne.s32.totalorder %s177, %s179
      %p183 = scmp.eq.s32.totalorder %s24, 0
      %p184 = por %p182, %p183
      %p185 = scmp.ne.s32.totalorder %s177, %s179
      %p186 = scmp.eq.s32.totalorder %s29, 8
      %p187 = por %p185, %p186
      %p188 = scmp.ne.s32.totalorder %s179, %s180
      %p189 = scmp.eq.s32.totalorder %s29, 0
      %p190 = por %p188, %p189
      %p191 = scmp.ne.s32.totalorder %s179, %s180
      %p192 = scmp.eq.s32.totalorder %s30, 8
      %p193 = por %p191, %p192
      %p195 = scmp.ne.s32.totalorder %s180, %s194
      %p196 = scmp.eq.s32.totalorder %s30, 0
      %p197 = por %p195, %p196
      %s198 = ssub.s32 %s31, %s43
      %p199 = scmp.eq.s32.totalorder %s198, 0
      %s201 = sadd.s32 %s200, 1
      %s202 = scalar_select %p199, %s200, %s201
      %p205 = pneg %p199
      %p206 = scmp.eq.s32.totalorder %s24, 8
      %p207 = por %p205, %p206
      %p208 = scmp.ne.s32.totalorder %s200, %s203
      %p209 = scmp.eq.s32.totalorder %s24, 0
      %p210 = por %p208, %p209
      %p211 = scmp.ne.s32.totalorder %s200, %s203
      %p212 = scmp.eq.s32.totalorder %s29, 8
      %p213 = por %p211, %p212
      %p214 = scmp.ne.s32.totalorder %s203, %s204
      %p215 = scmp.eq.s32.totalorder %s29, 0
      %p216 = por %p214, %p215
      %p217 = scmp.ne.s32.totalorder %s203, %s204
      %p218 = scmp.eq.s32.totalorder %s30, 8
      %p219 = por %p217, %p218
      %p221 = scmp.ne.s32.totalorder %s204, %s220
      %p222 = scmp.eq.s32.totalorder %s30, 0
      %p223 = por %p221, %p222
      %p224 = scmp.le.s32.totalorder 1, %s24
      %p225 = scmp.lt.s32.totalorder %s24, 10
      %p226 = pnand %p224, %p225
      %p227 = pneg %p226
      // Predicated region
      $region9: #{net_cell_forward.3} parent=5 // pred_check
        _
      $region10: #{net_cell_forward.3} parent=5 // pred_check_branch
        %229 = sbr.rel (%p226) target = $region12
      $region11: #{net_cell_forward.3} parent=5 // pred_region
        %s230 = ssub.s32 %s24, 1
        // Predicated region
        $region13: #{net_cell_forward.3} parent=11 // pred_check
          %p231 = pneg %p101
        $region14: #{net_cell_forward.3} parent=11 // pred_check_branch
          %233 = sbr.rel (%p231) target = $region16
        $region15: #{net_cell_forward.3} parent=11 // pred_region
          _
        $region16: #{net_cell_forward.3} parent=11 // pred_fallthru
          _
        // Predicated region
        $region17: #{net_cell_forward.3} parent=11 // pred_check
          %p234 = pneg %p148
        $region18: #{net_cell_forward.3} parent=11 // pred_check_branch
          %236 = sbr.rel (%p234) target = $region20
        $region19: #{net_cell_forward.3} parent=11 // pred_region
          _
        $region20: #{net_cell_forward.3} parent=11 // pred_fallthru
          _
        // Predicated region
        $region21: #{net_cell_forward.3} parent=11 // pred_check
          %p237 = pneg %p169
        $region22: #{net_cell_forward.3} parent=11 // pred_check_branch
          %239 = sbr.rel (%p237) target = $region24
        $region23: #{net_cell_forward.3} parent=11 // pred_region
          _
        $region24: #{net_cell_forward.3} parent=11 // pred_fallthru
          _
        // Predicated region
        $region25: #{net_cell_forward.3} parent=11 // pred_check
          %p240 = pneg %p190
        $region26: #{net_cell_forward.3} parent=11 // pred_check_branch
          %242 = sbr.rel (%p240) target = $region28
        $region27: #{net_cell_forward.3} parent=11 // pred_region
          _
        $region28: #{net_cell_forward.3} parent=11 // pred_fallthru
          _
      $region12: #{net_cell_forward.3} parent=5 // pred_fallthru
        _
      %p243 = scmp.lt.s32.totalorder %s24, 9
      // Predicated region
      $region29: #{net_cell_forward.3} parent=5 // pred_check
        %p244 = pneg %p243
      $region30: #{net_cell_forward.3} parent=5 // pred_check_branch
        %246 = sbr.rel (%p244) target = $region32
      $region31: #{net_cell_forward.3} parent=5 // pred_region
        // Predicated region
        $region33: #{net_cell_forward.3} parent=31 // pred_check
          %p247 = pneg %p74
        $region34: #{net_cell_forward.3} parent=31 // pred_check_branch
          %249 = sbr.rel (%p247) target = $region36
        $region35: #{net_cell_forward.3} parent=31 // pred_region
          %s250 = sand.u32 %s64, 1
          %s251 = sand.u32 %s64, 1
          %s252 = smul.addr %s251, 32
          %s253 = scalar_lea.vmem [#allocation6], %s252
          %s254 = sshra.s32 %s32, 7
          %s255 = sand.u32 %s32, 127
          %s256 = sadd.s32 %s254, %s31
          %s257 = smul.u32 %s256, 128
          %s258 = sshra.s32 %s32, 7
          %s259 = sand.u32 %s32, 127
          %s260 = sadd.s32 %s257, %s259
          %s261 = sld [smem:[#allocation5 + %s260]]
          %s262 = smul.u32 16, %s31
          %s263 = smul.addr %s262, 3
          %s264 = sadd.s32 %s261, %s263
          %s265 = smul.addr %s264, 2
          %s266 = scalar_lea.vmem %s2, %s265
          // Predicated region
          $region37: #{net_cell_forward.3} parent=35 // pred_check
            _
          $region38: #{net_cell_forward.3} parent=35 // pred_check_branch
            %268 = sbr.rel (0) target = $region40
          $region39: #{net_cell_forward.3} parent=35 // pred_region
            // Predicated region
            $region41: #{net_cell_forward.3} parent=39 // pred_check
              _
            $region42: #{net_cell_forward.3} parent=39 // pred_check_branch
              %270 = sbr.rel target = $region44
            $region43: #{net_cell_forward.3} parent=39 // pred_region
              // Predicated region
              $region56: #{net_cell_forward.3} parent=43 // pred_check
                _
              $region57: #{net_cell_forward.3} parent=43 // pred_check_branch
                %315 = sbr.rel (0) target = $region59
              $region58: #{net_cell_forward.3} parent=43 // pred_region
                loop: start=0, step=1, limit=1
                $region60: #{net_cell_forward.3} parent=58 // loop_pre_header
                  _
                $region61: #{net_cell_forward.3} parent=58 // loop_header
                  %s317 = sphi 0, %s321
                  %p318 = scmp.ge.s32.totalorder %s317, 1
                  %s322 = sphi %s266, %s266
                  %s323 = sphi %s253, %s253
                $region62: #{net_cell_forward.3} parent=58 // loop_header_branch
                  %320 = sbr.rel (%p318) target = $region66
                $region63: #{net_cell_forward.3} parent=58 // loop_body
                  _
                $region64: #{net_cell_forward.3} parent=58 // loop_footer
                  %s321 = sadd.s32 1, %s317
                $region65: #{net_cell_forward.3} parent=58 // loop_footer_branch
                  %316 = sbr.rel target = $region61
                $region66: #{net_cell_forward.3} parent=58 // loop_exit
                  _
                loop: start=0, step=1, limit=1
                $region67: #{net_cell_forward.3} parent=58 // loop_pre_header
                  _
                $region68: #{net_cell_forward.3} parent=58 // loop_header
                  %s326 = sphi 0, %s330
                  %p327 = scmp.ge.s32.totalorder %s326, 1
                  %s331 = sphi %s266, %s266
                  %s332 = sphi %s253, %s253
                $region69: #{net_cell_forward.3} parent=58 // loop_header_branch
                  %329 = sbr.rel (%p327) target = $region73
                $region70: #{net_cell_forward.3} parent=58 // loop_body
                  %v333 = vld [vmem:[%s331] sm:$0x3]
                  %334 = vst [vmem:[%s332] sm:$0x3] %v333
                  %v335 = vld [vmem:[%s331 + $0x6] sm:$0x3]
                  %336 = vst [vmem:[%s332 + $0x2] sm:$0x3] %v335
                  %v337 = vld [vmem:[%s331 + $0xc] sm:$0x3]
                  %338 = vst [vmem:[%s332 + $0x4] sm:$0x3] %v337
                  %v339 = vld [vmem:[%s331 + $0x12] sm:$0x3]
                  %340 = vst [vmem:[%s332 + $0x6] sm:$0x3] %v339
                  %v341 = vld [vmem:[%s331 + $0x18] sm:$0x3]
                  %342 = vst [vmem:[%s332 + $0x8] sm:$0x3] %v341
                  %v343 = vld [vmem:[%s331 + $0x1e] sm:$0x3]
                  %344 = vst [vmem:[%s332 + $0xa] sm:$0x3] %v343
                  %v345 = vld [vmem:[%s331 + $0x24] sm:$0x3]
                  %346 = vst [vmem:[%s332 + $0xc] sm:$0x3] %v345
                  %v347 = vld [vmem:[%s331 + $0x2a] sm:$0x3]
                  %348 = vst [vmem:[%s332 + $0xe] sm:$0x3] %v347
                  %v349 = vld [vmem:[%s331 + $0x30] sm:$0x3]
                  %350 = vst [vmem:[%s332 + $0x10] sm:$0x3] %v349
                  %v351 = vld [vmem:[%s331 + $0x36] sm:$0x3]
                  %352 = vst [vmem:[%s332 + $0x12] sm:$0x3] %v351
                  %v353 = vld [vmem:[%s331 + $0x3c] sm:$0x3]
                  %354 = vst [vmem:[%s332 + $0x14] sm:$0x3] %v353
                  %v355 = vld [vmem:[%s331 + $0x42] sm:$0x3]
                  %356 = vst [vmem:[%s332 + $0x16] sm:$0x3] %v355
                  %v357 = vld [vmem:[%s331 + $0x48] sm:$0x3]
                  %358 = vst [vmem:[%s332 + $0x18] sm:$0x3] %v357
                  %v359 = vld [vmem:[%s331 + $0x4e] sm:$0x3]
                  %360 = vst [vmem:[%s332 + $0x1a] sm:$0x3] %v359
                  %v361 = vld [vmem:[%s331 + $0x54] sm:$0x3]
                  %362 = vst [vmem:[%s332 + $0x1c] sm:$0x3] %v361
                  %v363 = vld [vmem:[%s331 + $0x5a] sm:$0x3]
                  %364 = vst [vmem:[%s332 + $0x1e] sm:$0x3] %v363
                $region71: #{net_cell_forward.3} parent=58 // loop_footer
                  %s330 = sadd.s32 1, %s326
                $region72: #{net_cell_forward.3} parent=58 // loop_footer_branch
                  %325 = sbr.rel target = $region68
                $region73: #{net_cell_forward.3} parent=58 // loop_exit
                  _
              $region59: #{net_cell_forward.3} parent=43 // pred_fallthru
                _
            $region44: #{net_cell_forward.3} parent=39 // pred_fallthru
              _
            // Predicated region
            $region45: #{net_cell_forward.3} parent=39 // pred_check
              _
            $region46: #{net_cell_forward.3} parent=39 // pred_check_branch
              %272 = sbr.rel (0) target = $region48
            $region47: #{net_cell_forward.3} parent=39 // pred_region
              loop: start=0, step=1, limit=1
              $region49: #{net_cell_forward.3} parent=47 // loop_pre_header
                _
              $region50: #{net_cell_forward.3} parent=47 // loop_header
                %s275 = sphi 0, %s279
                %p276 = scmp.ge.s32.totalorder %s275, 1
                %s280 = sphi %s266, %s266
                %s281 = sphi %s253, %s253
              $region51: #{net_cell_forward.3} parent=47 // loop_header_branch
                %278 = sbr.rel (%p276) target = $region55
              $region52: #{net_cell_forward.3} parent=47 // loop_body
                %v282 = vld [vmem:[%s280] sm:$0x3]
                %283 = vst [vmem:[%s281] sm:$0x3] %v282
                %v284 = vld [vmem:[%s280 + $0x6] sm:$0x3]
                %285 = vst [vmem:[%s281 + $0x2] sm:$0x3] %v284
                %v286 = vld [vmem:[%s280 + $0xc] sm:$0x3]
                %287 = vst [vmem:[%s281 + $0x4] sm:$0x3] %v286
                %v288 = vld [vmem:[%s280 + $0x12] sm:$0x3]
                %289 = vst [vmem:[%s281 + $0x6] sm:$0x3] %v288
                %v290 = vld [vmem:[%s280 + $0x18] sm:$0x3]
                %291 = vst [vmem:[%s281 + $0x8] sm:$0x3] %v290
                %v292 = vld [vmem:[%s280 + $0x1e] sm:$0x3]
                %293 = vst [vmem:[%s281 + $0xa] sm:$0x3] %v292
                %v294 = vld [vmem:[%s280 + $0x24] sm:$0x3]
                %295 = vst [vmem:[%s281 + $0xc] sm:$0x3] %v294
                %v296 = vld [vmem:[%s280 + $0x2a] sm:$0x3]
                %297 = vst [vmem:[%s281 + $0xe] sm:$0x3] %v296
                %v298 = vld [vmem:[%s280 + $0x30] sm:$0x3]
                %299 = vst [vmem:[%s281 + $0x10] sm:$0x3] %v298
                %v300 = vld [vmem:[%s280 + $0x36] sm:$0x3]
                %301 = vst [vmem:[%s281 + $0x12] sm:$0x3] %v300
                %v302 = vld [vmem:[%s280 + $0x3c] sm:$0x3]
                %303 = vst [vmem:[%s281 + $0x14] sm:$0x3] %v302
                %v304 = vld [vmem:[%s280 + $0x42] sm:$0x3]
                %305 = vst [vmem:[%s281 + $0x16] sm:$0x3] %v304
                %v306 = vld [vmem:[%s280 + $0x48] sm:$0x3]
                %307 = vst [vmem:[%s281 + $0x18] sm:$0x3] %v306
                %v308 = vld [vmem:[%s280 + $0x4e] sm:$0x3]
                %309 = vst [vmem:[%s281 + $0x1a] sm:$0x3] %v308
                %v310 = vld [vmem:[%s280 + $0x54] sm:$0x3]
                %311 = vst [vmem:[%s281 + $0x1c] sm:$0x3] %v310
                %v312 = vld [vmem:[%s280 + $0x5a] sm:$0x3]
                %313 = vst [vmem:[%s281 + $0x1e] sm:$0x3] %v312
              $region53: #{net_cell_forward.3} parent=47 // loop_footer
                %s279 = sadd.s32 1, %s275
              $region54: #{net_cell_forward.3} parent=47 // loop_footer_branch
                %274 = sbr.rel target = $region50
              $region55: #{net_cell_forward.3} parent=47 // loop_exit
                _
            $region48: #{net_cell_forward.3} parent=39 // pred_fallthru
              _
          $region40: #{net_cell_forward.3} parent=35 // pred_fallthru
            _
          %365 = vnop
        $region36: #{net_cell_forward.3} parent=31 // pred_fallthru
          _
        // Predicated region
        $region74: #{net_cell_forward.3} parent=31 // pred_check
          %p366 = pneg %p121
        $region75: #{net_cell_forward.3} parent=31 // pred_check_branch
          %368 = sbr.rel (%p366) target = $region77
        $region76: #{net_cell_forward.3} parent=31 // pred_region
          %s369 = smul.u32 16, %s31
          %p370 = scmp.lt.s32.totalorder %s369, 47
          %s371 = scalar_select %p370, %s369, 47
          %s372 = smul.addr %s371, 8
          %s373 = scalar_lea.vmem %s4, %s372
          %s374 = smul.u32 16, %s31
        $region77: #{net_cell_forward.3} parent=31 // pred_fallthru
          _
      $region32: #{net_cell_forward.3} parent=5 // pred_fallthru
        _
      %p375 = scmp.le.s32.totalorder 1, %s24
      %p376 = scmp.lt.s32.totalorder %s24, 10
      %p377 = pnand %p375, %p376
      %p378 = pneg %p377
      // Predicated region
      $region78: #{net_cell_forward.3} parent=5 // pred_check
        _
      $region79: #{net_cell_forward.3} parent=5 // pred_check_branch
        %380 = sbr.rel (%p377) target = $region81
      $region80: #{net_cell_forward.3} parent=5 // pred_region
        %s381 = ssub.s32 %s24, 1
        %s382 = sand.u32 %s67, 1
        %s383 = sand.u32 %s67, 1
        %s384 = smul.addr %s383, 32
        %s385 = scalar_lea.vmem [#allocation6], %s384
        // Predicated region
        $region82: #{net_cell_forward.3} parent=80 // pred_check
          %p386 = pneg %p80
        $region83: #{net_cell_forward.3} parent=80 // pred_check_branch
          %388 = sbr.rel (%p386) target = $region85
        $region84: #{net_cell_forward.3} parent=80 // pred_region
          _
        $region85: #{net_cell_forward.3} parent=80 // pred_fallthru
          _
        %s389 = sand.u32 %s67, 1
        %s390 = sand.u32 %s67, 1
        %s391 = smul.addr %s390, 32
        %s392 = scalar_lea.vmem [#allocation6], %s391
        %p393 = pneg %p80
        %p394 = pneg %p77
        %p395 = pneg %p101
        %p396 = pneg %p98
        %s397 = smul.u32 16, %s33
        %p398 = scmp.lt.s32.totalorder %s397, 47
        %s399 = scalar_select %p398, %s397, 47
        %s400 = smul.addr %s399, 8
        %s401 = scalar_lea.vmem %s4, %s400
        %p402 = pneg %p127
        %p403 = pneg %p124
        %p404 = pneg %p148
        %p405 = pneg %p145
        %p406 = pneg %p169
        %p407 = pneg %p166
        %p408 = pneg %p190
        %p409 = pneg %p187
        %p410 = pneg %p216
        %p411 = pneg %p213
        %s412 = smul.u32 16, %s33
        %p413 = scmp.lt.s32.totalorder %s412, 47
        %s414 = scalar_select %p413, %s412, 47
        %s415 = smul.addr %s414, 8
        %s416 = scalar_lea.vmem %s8, %s415
        %s417 = sshra.s32 %s34, 7
        %s418 = sand.u32 %s34, 127
        %s419 = sadd.s32 %s417, %s33
        %s420 = smul.u32 %s419, 128
        %s421 = sshra.s32 %s34, 7
        %s422 = sand.u32 %s34, 127
        %s423 = sadd.s32 %s420, %s422
        %s424 = sld [smem:[#allocation5 + %s423]]
        %s425 = smul.u32 16, %s33
        %s426 = smul.u32 16, %s33
        %p427 = scmp.lt.s32.totalorder %s426, 47
        %s428 = scalar_select %p427, %s426, 47
        %s429 = smul.addr %s428, 8
        %s430 = scalar_lea.vmem %s4, %s429
        %s431 = smul.u32 16, %s33
        %s432 = smul.u32 16, %s33
        %p433 = scmp.lt.s32.totalorder %s432, 47
        %s434 = scalar_select %p433, %s432, 47
        %s435 = smul.addr %s434, 8
        %s436 = scalar_lea.vmem %s8, %s435
        %s437 = smul.u32 16, %s33
        %p439 = scmp.eq.s32.totalorder %s34, 0
        // Predicated region
        $region86: #{net_cell_forward.3} parent=80 // pred_check
          %p440 = pneg %p439
        $region87: #{net_cell_forward.3} parent=80 // pred_check_branch
          %442 = sbr.rel (%p440) target = $region89
        $region88: #{net_cell_forward.3} parent=80 // pred_region
          %vm443 = vcmask 261120
          %444 = vst.msk [vmem:[#allocation2] sm:$0xff] %vm443, 0.0
          %445 = vst.msk [vmem:[#allocation2 + $0x8] sm:$0xff] %vm443, 0.0
          %446 = vst.msk [vmem:[#allocation2 + $0x10] sm:$0xff] %vm443, 0.0
          %447 = vst.msk [vmem:[#allocation2 + $0x18] sm:$0xff] %vm443, 0.0
          %448 = vst.msk [vmem:[#allocation2 + $0x20] sm:$0xff] %vm443, 0.0
          %449 = vst.msk [vmem:[#allocation2 + $0x28] sm:$0xff] %vm443, 0.0
          %450 = vst.msk [vmem:[#allocation2 + $0x30] sm:$0xff] %vm443, 0.0
          %451 = vst.msk [vmem:[#allocation2 + $0x38] sm:$0xff] %vm443, 0.0
          %452 = vst.msk [vmem:[#allocation2 + $0x40] sm:$0xff] %vm443, 0.0
          %453 = vst.msk [vmem:[#allocation2 + $0x48] sm:$0xff] %vm443, 0.0
          %454 = vst.msk [vmem:[#allocation2 + $0x50] sm:$0xff] %vm443, 0.0
          %455 = vst.msk [vmem:[#allocation2 + $0x58] sm:$0xff] %vm443, 0.0
          %456 = vst.msk [vmem:[#allocation2 + $0x60] sm:$0xff] %vm443, 0.0
          %457 = vst.msk [vmem:[#allocation2 + $0x68] sm:$0xff] %vm443, 0.0
          %458 = vst.msk [vmem:[#allocation2 + $0x70] sm:$0xff] %vm443, 0.0
          %459 = vst.msk [vmem:[#allocation2 + $0x78] sm:$0xff] %vm443, 0.0
        $region89: #{net_cell_forward.3} parent=80 // pred_fallthru
          _
        %s460 = sld [smem:[#allocation4 + %s33]]
        %p461 = scmp.lt.s32.totalorder %s34, %s460
        // Predicated region
        $region90: #{net_cell_forward.3} parent=80 // pred_check
          %p462 = pneg %p461
        $region91: #{net_cell_forward.3} parent=80 // pred_check_branch
          %464 = sbr.rel (%p462) target = $region93
        $region92: #{net_cell_forward.3} parent=80 // pred_region
          %v465 = vld [vmem:[%s385] sm:$0x3]
          %v466 = vld [vmem:[%s385 + $0x2] sm:$0x3]
          %v467 = vld [vmem:[%s385 + $0x4] sm:$0x3]
          %v468 = vld [vmem:[%s385 + $0x6] sm:$0x3]
          %v469 = vld [vmem:[%s385 + $0x8] sm:$0x3]
          %v470 = vld [vmem:[%s385 + $0xa] sm:$0x3]
          %v471 = vld [vmem:[%s385 + $0xc] sm:$0x3]
          %v472 = vld [vmem:[%s385 + $0xe] sm:$0x3]
          %v473 = vld [vmem:[%s385 + $0x10] sm:$0x3]
          %v474 = vld [vmem:[%s385 + $0x12] sm:$0x3]
          %v475 = vld [vmem:[%s385 + $0x14] sm:$0x3]
          %v476 = vld [vmem:[%s385 + $0x16] sm:$0x3]
          %v477 = vld [vmem:[%s385 + $0x18] sm:$0x3]
          %v478 = vld [vmem:[%s385 + $0x1a] sm:$0x3]
          %v479 = vld [vmem:[%s385 + $0x1c] sm:$0x3]
          %v480 = vld [vmem:[%s385 + $0x1e] sm:$0x3]
          %v481 = vunpack.c.l.s8.bf16 %v465
          %v482 = vunpack.c.l.s8.bf16 %v466
          %v483 = vunpack.c.l.s8.bf16 %v467
          %v484 = vunpack.c.l.s8.bf16 %v468
          %v485 = vunpack.c.l.s8.bf16 %v469
          %v486 = vunpack.c.l.s8.bf16 %v470
          %v487 = vunpack.c.l.s8.bf16 %v471
          %v488 = vunpack.c.l.s8.bf16 %v472
          %v489 = vunpack.c.l.s8.bf16 %v473
          %v490 = vunpack.c.l.s8.bf16 %v474
          %v491 = vunpack.c.l.s8.bf16 %v475
          %v492 = vunpack.c.l.s8.bf16 %v476
          %v493 = vunpack.c.l.s8.bf16 %v477
          %v494 = vunpack.c.l.s8.bf16 %v478
          %v495 = vunpack.c.l.s8.bf16 %v479
          %v496 = vunpack.c.l.s8.bf16 %v480
          %s497 = sshra.s32 %s34, 7
          %s498 = sand.u32 %s34, 127
          %s499 = sadd.s32 %s497, %s33
          %s500 = smul.u32 %s499, 128
          %s501 = sshra.s32 %s34, 7
          %s502 = sand.u32 %s34, 127
          %s503 = sadd.s32 %s500, %s502
          %s504 = sld [smem:[#allocation5 + %s503]]
          %s505 = smul.u32 %s504, 128
          %s506 = sshra.s32 %s505, 3
          %s507 = sand.u32 %s505, 7
          %s508 = smul.addr %s506, 4
          %s509 = scalar_lea.vmem %s3, %s508
          %v510 = vld [vmem:[%s509] sm:$0xf]
          %v511 = vld [vmem:[%s509 + $0x4] sm:$0xf]
          %v512 = vld [vmem:[%s509 + $0x8] sm:$0xf]
          %v513 = vld [vmem:[%s509 + $0xc] sm:$0xf]
          %v514 = vld [vmem:[%s509 + $0x10] sm:$0xf]
          %v515 = vld [vmem:[%s509 + $0x14] sm:$0xf]
          %v516 = vld [vmem:[%s509 + $0x18] sm:$0xf]
          %v517 = vld [vmem:[%s509 + $0x1c] sm:$0xf]
          %v518 = vld [vmem:[%s509 + $0x20] sm:$0xf]
          %v519 = vld [vmem:[%s509 + $0x24] sm:$0xf]
          %v520 = vld [vmem:[%s509 + $0x28] sm:$0xf]
          %v521 = vld [vmem:[%s509 + $0x2c] sm:$0xf]
          %v522 = vld [vmem:[%s509 + $0x30] sm:$0xf]
          %v523 = vld [vmem:[%s509 + $0x34] sm:$0xf]
          %v524 = vld [vmem:[%s509 + $0x38] sm:$0xf]
          %v525 = vld [vmem:[%s509 + $0x3c] sm:$0xf]
          %v526 = vld [vmem:[#allocation2] sm:$0xff]
          %v527 = vld [vmem:[#allocation2 + $0x8] sm:$0xff]
          %v528 = vld [vmem:[#allocation2 + $0x10] sm:$0xff]
          %v529 = vld [vmem:[#allocation2 + $0x18] sm:$0xff]
          %v530 = vld [vmem:[#allocation2 + $0x20] sm:$0xff]
          %v531 = vld [vmem:[#allocation2 + $0x28] sm:$0xff]
          %v532 = vld [vmem:[#allocation2 + $0x30] sm:$0xff]
          %v533 = vld [vmem:[#allocation2 + $0x38] sm:$0xff]
          %v534 = vld [vmem:[#allocation2 + $0x40] sm:$0xff]
          %v535 = vld [vmem:[#allocation2 + $0x48] sm:$0xff]
          %v536 = vld [vmem:[#allocation2 + $0x50] sm:$0xff]
          %v537 = vld [vmem:[#allocation2 + $0x58] sm:$0xff]
          %v538 = vld [vmem:[#allocation2 + $0x60] sm:$0xff]
          %v539 = vld [vmem:[#allocation2 + $0x68] sm:$0xff]
          %v540 = vld [vmem:[#allocation2 + $0x70] sm:$0xff]
          %v541 = vld [vmem:[#allocation2 + $0x78] sm:$0xff]
          %v558 = vunpack.c.l.b16 %v481
          %v559 = vunpack.c.l.b16 %v482
          %v560 = vunpack.c.l.b16 %v483
          %v561 = vunpack.c.l.b16 %v484
          %v562 = vunpack.c.l.b16 %v485
          %v563 = vunpack.c.l.b16 %v486
          %v564 = vunpack.c.l.b16 %v487
          %v565 = vunpack.c.l.b16 %v488
          %v566 = vunpack.c.l.b16 %v489
          %v567 = vunpack.c.l.b16 %v490
          %v568 = vunpack.c.l.b16 %v491
          %v569 = vunpack.c.l.b16 %v492
          %v570 = vunpack.c.l.b16 %v493
          %v571 = vunpack.c.l.b16 %v494
          %v572 = vunpack.c.l.b16 %v495
          %v573 = vunpack.c.l.b16 %v496
          %v574 = vpack.c.b16 %v559, %v558
          %v575 = vpack.c.b16 %v561, %v560
          %v576 = vpack.c.b16 %v563, %v562
          %v577 = vpack.c.b16 %v565, %v564
          %v578 = vpack.c.b16 %v567, %v566
          %v579 = vpack.c.b16 %v569, %v568
          %v580 = vpack.c.b16 %v571, %v570
          %v581 = vpack.c.b16 %v573, %v572
          %v606 = vunpack.c.l.b16 %v510
          %v607 = vunpack.c.l.b16 %v511
          %v608 = vunpack.c.l.b16 %v512
          %v609 = vunpack.c.l.b16 %v513
          %v610 = vunpack.c.l.b16 %v514
          %v611 = vunpack.c.l.b16 %v515
          %v612 = vunpack.c.l.b16 %v516
          %v613 = vunpack.c.l.b16 %v517
          %v614 = vunpack.c.l.b16 %v518
          %v615 = vunpack.c.l.b16 %v519
          %v616 = vunpack.c.l.b16 %v520
          %v617 = vunpack.c.l.b16 %v521
          %v618 = vunpack.c.l.b16 %v522
          %v619 = vunpack.c.l.b16 %v523
          %v620 = vunpack.c.l.b16 %v524
          %v621 = vunpack.c.l.b16 %v525
          %v622 = vpack.c.b16 %v607, %v606
          %v623 = vpack.c.b16 %v609, %v608
          %v624 = vpack.c.b16 %v611, %v610
          %v625 = vpack.c.b16 %v613, %v612
          %v626 = vpack.c.b16 %v615, %v614
          %v627 = vpack.c.b16 %v617, %v616
          %v628 = vpack.c.b16 %v619, %v618
          %v629 = vpack.c.b16 %v621, %v620
          %638 = vmatprep.subr.bf16.mxu0 0
          %639 = vmatpush1.bf16.msra.mxu0 %v622
          %640 = vmatprep.subr.bf16.mxu0 0
          %641 = vmatpush1.bf16.msra.mxu0 %v623
          %642 = vmatprep.subr.bf16.mxu0 0
          %643 = vmatpush1.bf16.msra.mxu0 %v624
          %644 = vmatprep.subr.bf16.mxu0 0
          %645 = vmatpush1.bf16.msra.mxu0 %v625
          %646 = vmatprep.subr.bf16.mxu0 0
          %647 = vmatpush1.bf16.msra.mxu0 %v626
          %648 = vmatprep.subr.bf16.mxu0 0
          %649 = vmatpush1.bf16.msra.mxu0 %v627
          %650 = vmatprep.subr.bf16.mxu0 0
          %651 = vmatpush1.bf16.msra.mxu0 %v628
          %652 = vmatprep.subr.bf16.mxu0 0
          %653 = vmatpush1.bf16.msra.mxu0 %v629
          %654 = vmatprep.subr.bf16.mxu0 0
          %655 = vmatpush1.bf16.msra.mxu0 0
          %656 = vmatprep.subr.bf16.mxu0 0
          %657 = vmatpush1.bf16.msra.mxu0 0
          %658 = vmatprep.subr.bf16.mxu0 0
          %659 = vmatpush1.bf16.msra.mxu0 0
          %660 = vmatprep.subr.bf16.mxu0 0
          %661 = vmatpush1.bf16.msra.mxu0 0
          %662 = vmatprep.subr.bf16.mxu0 0
          %663 = vmatpush1.bf16.msra.mxu0 0
          %664 = vmatprep.subr.bf16.mxu0 0
          %665 = vmatpush1.bf16.msra.mxu0 0
          %666 = vmatprep.subr.bf16.mxu0 0
          %667 = vmatpush1.bf16.msra.mxu0 0
          %668 = vmatprep.subr.bf16.mxu0 0
          %669 = vmatpush1.bf16.msra.mxu0 0
          %670 = vmatprep.mubr.bf16.mxu0 0
          %671 = vmatmul.mubr.bf16.gmra.mrb[0].mxu0 %v574
          %v672 = vpop.f32.mrb[0].mxu0
          %v673 = vadd.f32 0.0, %v672
          %v674 = vpop.f32.mrb[0].mxu0
          %v675 = vpop.f32.mrb[0].mxu0
          %v676 = vadd.f32 0.0, %v675
          %v677 = vpop.f32.mrb[0].mxu0
          %678 = vmatprep.mubr.bf16.mxu0 0
          %679 = vmatmul.mubr.bf16.gmra.mrb[0].mxu0 %v575
          %v680 = vpop.f32.mrb[0].mxu0
          %v681 = vadd.f32 0.0, %v680
          %v682 = vpop.f32.mrb[0].mxu0
          %v683 = vpop.f32.mrb[0].mxu0
          %v684 = vadd.f32 0.0, %v683
          %v685 = vpop.f32.mrb[0].mxu0
          %686 = vmatprep.mubr.bf16.mxu0 0
          %687 = vmatmul.mubr.bf16.gmra.mrb[0].mxu0 %v576
          %v688 = vpop.f32.mrb[0].mxu0
          %v689 = vadd.f32 0.0, %v688
          %v690 = vpop.f32.mrb[0].mxu0
          %v691 = vpop.f32.mrb[0].mxu0
          %v692 = vadd.f32 0.0, %v691
          %v693 = vpop.f32.mrb[0].mxu0
          %694 = vmatprep.mubr.bf16.mxu0 0
          %695 = vmatmul.mubr.bf16.gmra.mrb[0].mxu0 %v577
          %v696 = vpop.f32.mrb[0].mxu0
          %v697 = vadd.f32 0.0, %v696
          %v698 = vpop.f32.mrb[0].mxu0
          %v699 = vpop.f32.mrb[0].mxu0
          %v700 = vadd.f32 0.0, %v699
          %v701 = vpop.f32.mrb[0].mxu0
          %702 = vmatprep.mubr.bf16.mxu0 0
          %703 = vmatmul.mubr.bf16.gmra.mrb[0].mxu0 %v578
          %v704 = vpop.f32.mrb[0].mxu0
          %v705 = vadd.f32 0.0, %v704
          %v706 = vpop.f32.mrb[0].mxu0
          %v707 = vpop.f32.mrb[0].mxu0
          %v708 = vadd.f32 0.0, %v707
          %v709 = vpop.f32.mrb[0].mxu0
          %710 = vmatprep.mubr.bf16.mxu0 0
          %711 = vmatmul.mubr.bf16.gmra.mrb[0].mxu0 %v579
          %v712 = vpop.f32.mrb[0].mxu0
          %v713 = vadd.f32 0.0, %v712
          %v714 = vpop.f32.mrb[0].mxu0
          %v715 = vpop.f32.mrb[0].mxu0
          %v716 = vadd.f32 0.0, %v715
          %v717 = vpop.f32.mrb[0].mxu0
          %718 = vmatprep.mubr.bf16.mxu0 0
          %719 = vmatmul.mubr.bf16.gmra.mrb[0].mxu0 %v580
          %v720 = vpop.f32.mrb[0].mxu0
          %v721 = vadd.f32 0.0, %v720
          %v722 = vpop.f32.mrb[0].mxu0
          %v723 = vpop.f32.mrb[0].mxu0
          %v724 = vadd.f32 0.0, %v723
          %v725 = vpop.f32.mrb[0].mxu0
          %726 = vmatprep.mubr.bf16.mxu0 0
          %727 = vmatmul.mubr.bf16.gmra.mrb[0].mxu0 %v581
          %v728 = vpop.f32.mrb[0].mxu0
          %v729 = vadd.f32 0.0, %v728
          %v730 = vpop.f32.mrb[0].mxu0
          %v731 = vpop.f32.mrb[0].mxu0
          %v732 = vadd.f32 0.0, %v731
          %v733 = vpop.f32.mrb[0].mxu0
          %734 = vdwg.mxu0
          %v735 = vadd.f32 %v526, %v673
          %v736 = vadd.f32 %v527, %v676
          %v737 = vadd.f32 %v528, %v681
          %v738 = vadd.f32 %v529, %v684
          %v739 = vadd.f32 %v530, %v689
          %v740 = vadd.f32 %v531, %v692
          %v741 = vadd.f32 %v532, %v697
          %v742 = vadd.f32 %v533, %v700
          %v743 = vadd.f32 %v534, %v705
          %v744 = vadd.f32 %v535, %v708
          %v745 = vadd.f32 %v536, %v713
          %v746 = vadd.f32 %v537, %v716
          %v747 = vadd.f32 %v538, %v721
          %v748 = vadd.f32 %v539, %v724
          %v749 = vadd.f32 %v540, %v729
          %v750 = vadd.f32 %v541, %v732
          %vm751 = vcmask 261120
          %752 = vst.msk [vmem:[#allocation2] sm:$0xff] %vm751, %v735
          %753 = vst.msk [vmem:[#allocation2 + $0x8] sm:$0xff] %vm751, %v736
          %754 = vst.msk [vmem:[#allocation2 + $0x10] sm:$0xff] %vm751, %v737
          %755 = vst.msk [vmem:[#allocation2 + $0x18] sm:$0xff] %vm751, %v738
          %756 = vst.msk [vmem:[#allocation2 + $0x20] sm:$0xff] %vm751, %v739
          %757 = vst.msk [vmem:[#allocation2 + $0x28] sm:$0xff] %vm751, %v740
          %758 = vst.msk [vmem:[#allocation2 + $0x30] sm:$0xff] %vm751, %v741
          %759 = vst.msk [vmem:[#allocation2 + $0x38] sm:$0xff] %vm751, %v742
          %760 = vst.msk [vmem:[#allocation2 + $0x40] sm:$0xff] %vm751, %v743
          %761 = vst.msk [vmem:[#allocation2 + $0x48] sm:$0xff] %vm751, %v744
          %762 = vst.msk [vmem:[#allocation2 + $0x50] sm:$0xff] %vm751, %v745
          %763 = vst.msk [vmem:[#allocation2 + $0x58] sm:$0xff] %vm751, %v746
          %764 = vst.msk [vmem:[#allocation2 + $0x60] sm:$0xff] %vm751, %v747
          %765 = vst.msk [vmem:[#allocation2 + $0x68] sm:$0xff] %vm751, %v748
          %766 = vst.msk [vmem:[#allocation2 + $0x70] sm:$0xff] %vm751, %v749
          %767 = vst.msk [vmem:[#allocation2 + $0x78] sm:$0xff] %vm751, %v750
        $region93: #{net_cell_forward.3} parent=80 // pred_fallthru
          _
        %p768 = scmp.eq.s32.totalorder %s34, 2
        // Predicated region
        $region94: #{net_cell_forward.3} parent=80 // pred_check
          %p769 = pneg %p768
        $region95: #{net_cell_forward.3} parent=80 // pred_check_branch
          %771 = sbr.rel (%p769) target = $region97
        $region96: #{net_cell_forward.3} parent=80 // pred_region
          %v772 = vld [vmem:[%s430] sm:$0xff]
          %v773 = vld [vmem:[%s430 + $0x8] sm:$0xff]
          %v774 = vld [vmem:[%s430 + $0x10] sm:$0xff]
          %v775 = vld [vmem:[%s430 + $0x18] sm:$0xff]
          %v776 = vld [vmem:[%s430 + $0x20] sm:$0xff]
          %v777 = vld [vmem:[%s430 + $0x28] sm:$0xff]
          %v778 = vld [vmem:[%s430 + $0x30] sm:$0xff]
          %v779 = vld [vmem:[%s430 + $0x38] sm:$0xff]
          %v780 = vld [vmem:[%s430 + $0x40] sm:$0xff]
          %v781 = vld [vmem:[%s430 + $0x48] sm:$0xff]
          %v782 = vld [vmem:[%s430 + $0x50] sm:$0xff]
          %v783 = vld [vmem:[%s430 + $0x58] sm:$0xff]
          %v784 = vld [vmem:[%s430 + $0x60] sm:$0xff]
          %v785 = vld [vmem:[%s430 + $0x68] sm:$0xff]
          %v786 = vld [vmem:[%s430 + $0x70] sm:$0xff]
          %v787 = vld [vmem:[%s430 + $0x78] sm:$0xff]
          %v788 = vld [vmem:[#allocation2] sm:$0xff]
          %v789 = vld [vmem:[#allocation2 + $0x8] sm:$0xff]
          %v790 = vld [vmem:[#allocation2 + $0x10] sm:$0xff]
          %v791 = vld [vmem:[#allocation2 + $0x18] sm:$0xff]
          %v792 = vld [vmem:[#allocation2 + $0x20] sm:$0xff]
          %v793 = vld [vmem:[#allocation2 + $0x28] sm:$0xff]
          %v794 = vld [vmem:[#allocation2 + $0x30] sm:$0xff]
          %v795 = vld [vmem:[#allocation2 + $0x38] sm:$0xff]
          %v796 = vld [vmem:[#allocation2 + $0x40] sm:$0xff]
          %v797 = vld [vmem:[#allocation2 + $0x48] sm:$0xff]
          %v798 = vld [vmem:[#allocation2 + $0x50] sm:$0xff]
          %v799 = vld [vmem:[#allocation2 + $0x58] sm:$0xff]
          %v800 = vld [vmem:[#allocation2 + $0x60] sm:$0xff]
          %v801 = vld [vmem:[#allocation2 + $0x68] sm:$0xff]
          %v802 = vld [vmem:[#allocation2 + $0x70] sm:$0xff]
          %v803 = vld [vmem:[#allocation2 + $0x78] sm:$0xff]
          %805 = vset.pattern.permute.xlu0 0
          %806 = vperm.xlu0 %805, %v772
          %v807 = vpop.permute.xlu0 %806
          %810 = vset.pattern.permute.xlu0 0
          %811 = vperm.xlu0 %810, %v773
          %v812 = vpop.permute.xlu0 %811
          %815 = vset.pattern.permute.xlu0 0
          %816 = vperm.xlu0 %815, %v774
          %v817 = vpop.permute.xlu0 %816
          %820 = vset.pattern.permute.xlu0 0
          %821 = vperm.xlu0 %820, %v775
          %v822 = vpop.permute.xlu0 %821
          %825 = vset.pattern.permute.xlu0 0
          %826 = vperm.xlu0 %825, %v776
          %v827 = vpop.permute.xlu0 %826
          %830 = vset.pattern.permute.xlu0 0
          %831 = vperm.xlu0 %830, %v777
          %v832 = vpop.permute.xlu0 %831
          %835 = vset.pattern.permute.xlu0 0
          %836 = vperm.xlu0 %835, %v778
          %v837 = vpop.permute.xlu0 %836
          %840 = vset.pattern.permute.xlu0 0
          %841 = vperm.xlu0 %840, %v779
          %v842 = vpop.permute.xlu0 %841
          %845 = vset.pattern.permute.xlu0 0
          %846 = vperm.xlu0 %845, %v780
          %v847 = vpop.permute.xlu0 %846
          %850 = vset.pattern.permute.xlu0 0
          %851 = vperm.xlu0 %850, %v781
          %v852 = vpop.permute.xlu0 %851
          %855 = vset.pattern.permute.xlu0 0
          %856 = vperm.xlu0 %855, %v782
          %v857 = vpop.permute.xlu0 %856
          %860 = vset.pattern.permute.xlu0 0
          %861 = vperm.xlu0 %860, %v783
          %v862 = vpop.permute.xlu0 %861
          %865 = vset.pattern.permute.xlu0 0
          %866 = vperm.xlu0 %865, %v784
          %v867 = vpop.permute.xlu0 %866
          %870 = vset.pattern.permute.xlu0 0
          %871 = vperm.xlu0 %870, %v785
          %v872 = vpop.permute.xlu0 %871
          %875 = vset.pattern.permute.xlu0 0
          %876 = vperm.xlu0 %875, %v786
          %v877 = vpop.permute.xlu0 %876
          %880 = vset.pattern.permute.xlu0 0
          %881 = vperm.xlu0 %880, %v787
          %v882 = vpop.permute.xlu0 %881
          %v884 = vmul.f32 %v807, %v788
          %v885 = vmul.f32 %v812, %v789
          %v886 = vmul.f32 %v817, %v790
          %v887 = vmul.f32 %v822, %v791
          %v888 = vmul.f32 %v827, %v792
          %v889 = vmul.f32 %v832, %v793
          %v890 = vmul.f32 %v837, %v794
          %v891 = vmul.f32 %v842, %v795
          %v892 = vmul.f32 %v847, %v796
          %v893 = vmul.f32 %v852, %v797
          %v894 = vmul.f32 %v857, %v798
          %v895 = vmul.f32 %v862, %v799
          %v896 = vmul.f32 %v867, %v800
          %v897 = vmul.f32 %v872, %v801
          %v898 = vmul.f32 %v877, %v802
          %v899 = vmul.f32 %v882, %v803
          %v900 = vld [vmem:[%s5] sm:$0x1]
          %v902 = vlaneseq
          %v903 = vshrl.u32 %v902, 7
          %v904 = vsub.s32 0, %v903
          %v905 = vrot.slane %v900, %v904
          %v907 = vadd.f32 %v884, %v905
          %v908 = vadd.f32 %v885, %v905
          %v909 = vadd.f32 %v886, %v905
          %v910 = vadd.f32 %v887, %v905
          %v911 = vadd.f32 %v888, %v905
          %v912 = vadd.f32 %v889, %v905
          %v913 = vadd.f32 %v890, %v905
          %v914 = vadd.f32 %v891, %v905
          %v915 = vadd.f32 %v892, %v905
          %v916 = vadd.f32 %v893, %v905
          %v917 = vadd.f32 %v894, %v905
          %v918 = vadd.f32 %v895, %v905
          %v919 = vadd.f32 %v896, %v905
          %v920 = vadd.f32 %v897, %v905
          %v921 = vadd.f32 %v898, %v905
          %v922 = vadd.f32 %v899, %v905
          %v923 = vmax.f32 %v907, 0.0
          %v924 = vmax.f32 %v908, 0.0
          %v925 = vmax.f32 %v909, 0.0
          %v926 = vmax.f32 %v910, 0.0
          %v927 = vmax.f32 %v911, 0.0
          %v928 = vmax.f32 %v912, 0.0
          %v929 = vmax.f32 %v913, 0.0
          %v930 = vmax.f32 %v914, 0.0
          %v931 = vmax.f32 %v915, 0.0
          %v932 = vmax.f32 %v916, 0.0
          %v933 = vmax.f32 %v917, 0.0
          %v934 = vmax.f32 %v918, 0.0
          %v935 = vmax.f32 %v919, 0.0
          %v936 = vmax.f32 %v920, 0.0
          %v937 = vmax.f32 %v921, 0.0
          %v938 = vmax.f32 %v922, 0.0
          %v939 = vpack.c.bf16 %v924, %v923
          %v940 = vpack.c.bf16 %v926, %v925
          %v941 = vpack.c.bf16 %v928, %v927
          %v942 = vpack.c.bf16 %v930, %v929
          %v943 = vpack.c.bf16 %v932, %v931
          %v944 = vpack.c.bf16 %v934, %v933
          %v945 = vpack.c.bf16 %v936, %v935
          %v946 = vpack.c.bf16 %v938, %v937
          %v947 = vld [vmem:[%s6] sm:$0xf]
          %v948 = vld [vmem:[%s6 + $0x4] sm:$0xf]
          %v949 = vld [vmem:[%s6 + $0x8] sm:$0xf]
          %v950 = vld [vmem:[%s6 + $0xc] sm:$0xf]
          %v951 = vld [vmem:[%s7] sm:$0x1]
          %v953 = vlaneseq
          %v954 = vshrl.u32 %v953, 7
          %v955 = vsub.s32 0, %v954
          %v956 = vrot.slane %v951, %v955
          %v962 = vunpack.c.l.b16 %v947
          %v963 = vunpack.c.l.b16 %v948
          %v964 = vunpack.c.l.b16 %v949
          %v965 = vunpack.c.l.b16 %v950
          %v966 = vpack.c.b16 %v963, %v962
          %v967 = vpack.c.b16 %v965, %v964
          %vm970 = vcmask 261120
          %v972 = vsel %vm970, %v939, 0
          %v975 = vsel %vm970, %v940, 0
          %v978 = vsel %vm970, %v941, 0
          %v981 = vsel %vm970, %v942, 0
          %v984 = vsel %vm970, %v943, 0
          %v987 = vsel %vm970, %v944, 0
          %v990 = vsel %vm970, %v945, 0
          %v993 = vsel %vm970, %v946, 0
          %995 = vmatprep.subr.bf16.mxu0 0
          %996 = vmatpush1.bf16.msra.mxu0 %v966
          %997 = vmatprep.subr.bf16.mxu0 0
          %998 = vmatpush1.bf16.msra.mxu0 %v967
          %999 = vmatprep.subr.bf16.mxu0 0
          %1000 = vmatpush1.bf16.msra.mxu0 0
          %1001 = vmatprep.subr.bf16.mxu0 0
          %1002 = vmatpush1.bf16.msra.mxu0 0
          %1003 = vmatprep.subr.bf16.mxu0 0
          %1004 = vmatpush1.bf16.msra.mxu0 0
          %1005 = vmatprep.subr.bf16.mxu0 0
          %1006 = vmatpush1.bf16.msra.mxu0 0
          %1007 = vmatprep.subr.bf16.mxu0 0
          %1008 = vmatpush1.bf16.msra.mxu0 0
          %1009 = vmatprep.subr.bf16.mxu0 0
          %1010 = vmatpush1.bf16.msra.mxu0 0
          %1011 = vmatprep.subr.bf16.mxu0 0
          %1012 = vmatpush1.bf16.msra.mxu0 0
          %1013 = vmatprep.subr.bf16.mxu0 0
          %1014 = vmatpush1.bf16.msra.mxu0 0
          %1015 = vmatprep.subr.bf16.mxu0 0
          %1016 = vmatpush1.bf16.msra.mxu0 0
          %1017 = vmatprep.subr.bf16.mxu0 0
          %1018 = vmatpush1.bf16.msra.mxu0 0
          %1019 = vmatprep.subr.bf16.mxu0 0
          %1020 = vmatpush1.bf16.msra.mxu0 0
          %1021 = vmatprep.subr.bf16.mxu0 0
          %1022 = vmatpush1.bf16.msra.mxu0 0
          %1023 = vmatprep.subr.bf16.mxu0 0
          %1024 = vmatpush1.bf16.msra.mxu0 0
          %1025 = vmatprep.subr.bf16.mxu0 0
          %1026 = vmatpush1.bf16.msra.mxu0 0
          %1027 = vmatprep.mubr.bf16.mxu0 0
          %1028 = vmatmul.mubr.bf16.gmra.mrb[0].mxu0 %v972
          %v1029 = vpop.f32.mrb[0].mxu0
          %v1030 = vadd.f32 %v956, %v1029
          %v1031 = vpop.f32.mrb[0].mxu0
          %v1032 = vpop.f32.mrb[0].mxu0
          %v1033 = vadd.f32 %v956, %v1032
          %v1034 = vpop.f32.mrb[0].mxu0
          %1035 = vmatprep.mubr.bf16.mxu0 0
          %1036 = vmatmul.mubr.bf16.gmra.mrb[0].mxu0 %v975
          %v1037 = vpop.f32.mrb[0].mxu0
          %v1038 = vadd.f32 %v956, %v1037
          %v1039 = vpop.f32.mrb[0].mxu0
          %v1040 = vpop.f32.mrb[0].mxu0
          %v1041 = vadd.f32 %v956, %v1040
          %v1042 = vpop.f32.mrb[0].mxu0
          %1043 = vmatprep.mubr.bf16.mxu0 0
          %1044 = vmatmul.mubr.bf16.gmra.mrb[0].mxu0 %v978
          %v1045 = vpop.f32.mrb[0].mxu0
          %v1046 = vadd.f32 %v956, %v1045
          %v1047 = vpop.f32.mrb[0].mxu0
          %v1048 = vpop.f32.mrb[0].mxu0
          %v1049 = vadd.f32 %v956, %v1048
          %v1050 = vpop.f32.mrb[0].mxu0
          %1051 = vmatprep.mubr.bf16.mxu0 0
          %1052 = vmatmul.mubr.bf16.gmra.mrb[0].mxu0 %v981
          %v1053 = vpop.f32.mrb[0].mxu0
          %v1054 = vadd.f32 %v956, %v1053
          %v1055 = vpop.f32.mrb[0].mxu0
          %v1056 = vpop.f32.mrb[0].mxu0
          %v1057 = vadd.f32 %v956, %v1056
          %v1058 = vpop.f32.mrb[0].mxu0
          %1059 = vmatprep.mubr.bf16.mxu0 0
          %1060 = vmatmul.mubr.bf16.gmra.mrb[0].mxu0 %v984
          %v1061 = vpop.f32.mrb[0].mxu0
          %v1062 = vadd.f32 %v956, %v1061
          %v1063 = vpop.f32.mrb[0].mxu0
          %v1064 = vpop.f32.mrb[0].mxu0
          %v1065 = vadd.f32 %v956, %v1064
          %v1066 = vpop.f32.mrb[0].mxu0
          %1067 = vmatprep.mubr.bf16.mxu0 0
          %1068 = vmatmul.mubr.bf16.gmra.mrb[0].mxu0 %v987
          %v1069 = vpop.f32.mrb[0].mxu0
          %v1070 = vadd.f32 %v956, %v1069
          %v1071 = vpop.f32.mrb[0].mxu0
          %v1072 = vpop.f32.mrb[0].mxu0
          %v1073 = vadd.f32 %v956, %v1072
          %v1074 = vpop.f32.mrb[0].mxu0
          %1075 = vmatprep.mubr.bf16.mxu0 0
          %1076 = vmatmul.mubr.bf16.gmra.mrb[0].mxu0 %v990
          %v1077 = vpop.f32.mrb[0].mxu0
          %v1078 = vadd.f32 %v956, %v1077
          %v1079 = vpop.f32.mrb[0].mxu0
          %v1080 = vpop.f32.mrb[0].mxu0
          %v1081 = vadd.f32 %v956, %v1080
          %v1082 = vpop.f32.mrb[0].mxu0
          %1083 = vmatprep.mubr.bf16.mxu0 0
          %1084 = vmatmul.mubr.bf16.gmra.mrb[0].mxu0 %v993
          %v1085 = vpop.f32.mrb[0].mxu0
          %v1086 = vadd.f32 %v956, %v1085
          %v1087 = vpop.f32.mrb[0].mxu0
          %v1088 = vpop.f32.mrb[0].mxu0
          %v1089 = vadd.f32 %v956, %v1088
          %v1090 = vpop.f32.mrb[0].mxu0
          %1091 = vdwg.mxu0
          %1092 = vst [vmem:[%s436] sm:$0xff] %v1030
          %1093 = vst [vmem:[%s436 + $0x8] sm:$0xff] %v1033
          %1094 = vst [vmem:[%s436 + $0x10] sm:$0xff] %v1038
          %1095 = vst [vmem:[%s436 + $0x18] sm:$0xff] %v1041
          %1096 = vst [vmem:[%s436 + $0x20] sm:$0xff] %v1046
          %1097 = vst [vmem:[%s436 + $0x28] sm:$0xff] %v1049
          %1098 = vst [vmem:[%s436 + $0x30] sm:$0xff] %v1054
          %1099 = vst [vmem:[%s436 + $0x38] sm:$0xff] %v1057
          %1100 = vst [vmem:[%s436 + $0x40] sm:$0xff] %v1062
          %1101 = vst [vmem:[%s436 + $0x48] sm:$0xff] %v1065
          %1102 = vst [vmem:[%s436 + $0x50] sm:$0xff] %v1070
          %1103 = vst [vmem:[%s436 + $0x58] sm:$0xff] %v1073
          %1104 = vst [vmem:[%s436 + $0x60] sm:$0xff] %v1078
          %1105 = vst [vmem:[%s436 + $0x68] sm:$0xff] %v1081
          %1106 = vst [vmem:[%s436 + $0x70] sm:$0xff] %v1086
          %1107 = vst [vmem:[%s436 + $0x78] sm:$0xff] %v1089
        $region97: #{net_cell_forward.3} parent=80 // pred_fallthru
          _
        %s1108 = smul.u32 16, %s33
        %p1109 = scmp.lt.s32.totalorder %s1108, 47
        %s1110 = scalar_select %p1109, %s1108, 47
        %s1111 = smul.addr %s1110, 8
        %s1112 = scalar_lea.vmem %s8, %s1111
        // Predicated region
        $region98: #{net_cell_forward.3} parent=80 // pred_check
          %p1113 = pneg %p213
        $region99: #{net_cell_forward.3} parent=80 // pred_check_branch
          %1115 = sbr.rel (%p1113) target = $region101
        $region100: #{net_cell_forward.3} parent=80 // pred_region
          %s1116 = smul.u32 16, %s33
        $region101: #{net_cell_forward.3} parent=80 // pred_fallthru
          _
      $region81: #{net_cell_forward.3} parent=5 // pred_fallthru
        _
      %p1117 = scmp.le.s32.totalorder 2, %s24
      // Predicated region
      $region102: #{net_cell_forward.3} parent=5 // pred_check
        %p1118 = pneg %p1117
      $region103: #{net_cell_forward.3} parent=5 // pred_check_branch
        %1120 = sbr.rel (%p1118) target = $region105
      $region104: #{net_cell_forward.3} parent=5 // pred_region
        %s1121 = ssub.s32 %s24, 2
        // Predicated region
        $region106: #{net_cell_forward.3} parent=104 // pred_check
          %p1122 = pneg %p219
        $region107: #{net_cell_forward.3} parent=104 // pred_check_branch
          %1124 = sbr.rel (%p1122) target = $region109
        $region108: #{net_cell_forward.3} parent=104 // pred_region
          %s1125 = smul.u32 16, %s35
          %p1126 = scmp.lt.s32.totalorder %s1125, 47
          %s1127 = scalar_select %p1126, %s1125, 47
          %s1128 = smul.addr %s1127, 8
          %s1129 = scalar_lea.vmem %s8, %s1128
        $region109: #{net_cell_forward.3} parent=104 // pred_fallthru
          _
      $region105: #{net_cell_forward.3} parent=5 // pred_fallthru
        _
    $region6: #{net_cell_forward.3} parent=1 // loop_footer
      %s28 = sadd.s32 1, %s24
    $region7: #{net_cell_forward.3} parent=1 // loop_footer_branch
      %23 = sbr.rel target = $region3
    $region8: #{net_cell_forward.3} parent=1 // loop_exit
      _

</llo_original>
